<compile_context>
chip_gen: v7x
topology: tpu7x:2x2x1
jax: 0.10.0
libtpu: 0.0.40
codegen_flags: <defaults>
</compile_context>

<pallas_src>
import functools

import jax
import jax.numpy as jnp
import numpy as np
from jax.experimental import pallas as pl
from jax.experimental.pallas import tpu as pltpu


def _round_up(x, m):
    return (x + m - 1) // m * m


# -----------------------------------------------------------------------------
# init-time glue: interval bounds through the first Linear under the l_inf ball
# (== InfBall.bounds + DualLinear.bounds, as select_layer does for the ReLU)
# -----------------------------------------------------------------------------
def relu_dual_params(X, W, b, eps):
    l1 = jnp.abs(W).sum(axis=1)                       # (H,) row-wise l1 norm of W
    zc = X @ W.T + b[None, :]                         # (B, H) nominal pre-activation
    zl = zc - eps * l1[None, :]
    zu = zc + eps * l1[None, :]
    I = jnp.logical_and(zu > 0.0, zl < 0.0)           # crossing units
    d = (zl >= 0.0).astype(jnp.float32) + jnp.where(
        I, zu / jnp.where(I, zu - zl, 1.0), 0.0)      # d in [0, 1]
    return d, zl, I.astype(jnp.float32), zc


# -----------------------------------------------------------------------------
# Pallas kernel: one program per (batch tile i, objective j)
#
#   scal_ref SMEM (1,)         [eps]
#   c_ref    (TB, K)           objective vectors of this (i, j) block (objective-major rows)
#   p_ref    (TB, 1)           slack p for this (i, j) block
#   d_ref    (TB, Hd)          [ d1        | td1         ]   per batch (reused across j)
#   dr_ref   (TB, Hd)          [ d1*zl1*I1 | td1*tzl1*tI1]   per batch
#   dz_ref   (TB, Hd)          [ d1*zc1    | td1*tzc1    ]   per batch
#   w2n_ref  (K, Hd)           -[ W2 | tW2 ]                 shared
#   w1_ref   (Hd, D)           [ W1 ; tW1 ]                  shared
#   out_ref  (TB, 1)           dual objective minus the wrapper-side addc term
# -----------------------------------------------------------------------------
def _dual_tile_kernel(scal_ref, c_ref, p_ref, d_ref, dr_ref, dz_ref,
                      w2n_ref, w1_ref, out_ref, *, h_net, precision):
    f32 = jnp.float32

    def mm(a, b):  # (m,k) @ (k,n) on the MXU, f32 accumulate
        return jax.lax.dot_general(a, b, (((1,), (0,)), ((), ())),
                                   precision=precision,
                                   preferred_element_type=f32)

    eps = scal_ref[0]

    # A = (-c) @ [W2 | tW2]   (negation pre-folded into w2n) -> [ nu1 | q1 ]
    A = mm(c_ref[...], w2n_ref[...])                       # (TB, Hd)

    # pmask = [ 1 ... 1 | p ... p ]; p is applied AFTER the max below, so this is
    # valid for any sign of p (matches  s_net + p * s_t  of the torch forward).
    p_col = p_ref[...]                                     # (TB, 1)
    col = jax.lax.broadcasted_iota(jnp.int32, A.shape, 1)  # (TB, Hd)
    pm = jnp.where(col < h_net, 1.0, p_col)                # (TB, Hd)

    # ReLU dual objective  -  (bias1 + v.x)  in one lane reduce:
    #   sum(max(A,0) * [d*zl*I | td*tzl*tI] * pm)  -  sum(A * [d*zc | td*tzc] * pm)
    s1 = jnp.sum((jnp.maximum(A, 0.0) * dr_ref[...] - A * dz_ref[...]) * pm,
                 axis=-1, keepdims=True)                   # (TB, 1)

    u = A * d_ref[...] * pm                                # [ nu2 | p*q2 ]
    v = mm(u, w1_ref[...])                                 # (TB, D) = nu3 + p*q3
    o_eps = eps * jnp.sum(jnp.abs(v), axis=-1, keepdims=True)

    out_ref[...] = s1 - o_eps


# -----------------------------------------------------------------------------
# wrapper: DualNetworkDouble.forward(p, c, eta)  (RobustBounds == p = 0, see below)
# -----------------------------------------------------------------------------
def dual_network_double_forward(p, c, X, net_params, tnet_params, epsilon,
                                eta=None, batch_tile=512,
                                matmul_precision=jax.lax.Precision.HIGHEST):
    W1, b1, W2, b2 = net_params
    tW1, tb1, tW2, tb2 = tnet_params
    f32 = jnp.float32
    hp = jax.lax.Precision.HIGHEST
    B, M, K = c.shape
    D = X.shape[1]
    H, Ht = W1.shape[0], tW1.shape[0]
    Hd = H + Ht

    # __init__-time dual-network construction (bounds / ReLU coefficients)
    d1, zl1, I1, zc1 = relu_dual_params(X, W1, b1, epsilon)
    td1, tzl1, tI1, tzc1 = relu_dual_params(X, tW1, tb1, epsilon)

    # ---- batch-tile selection: balanced tiles, multiple of 8 sublanes ----
    n_btiles = max(1, -(-B // batch_tile))
    TB = _round_up(-(-B // n_btiles), 8)
    B_pad = n_btiles * TB

    def pad_rows(a):  # zero rows -> padded batches compute to exactly 0, sliced off below
        return a if a.shape[0] == B_pad else jnp.pad(a, ((0, B_pad - a.shape[0]), (0, 0)))

    # per-batch fused operands (NOT replicated over the M objectives; the objective
    # axis lives on the inner grid dimension and these blocks are reused across it)
    dcat = pad_rows(jnp.concatenate([d1, td1], axis=1).astype(f32))                     # (B_pad, Hd)
    drcat = pad_rows(jnp.concatenate([d1 * zl1 * I1, td1 * tzl1 * tI1], axis=1).astype(f32))
    dzcat = pad_rows(jnp.concatenate([d1 * zc1, td1 * tzc1], axis=1).astype(f32))

    # per-(objective, batch) operands, objective-major so each grid step reads one
    # contiguous (TB, .) block; row index = m * B_pad + b
    cT = jnp.swapaxes(c.astype(f32), 0, 1)                 # (M, B, K)
    pT = jnp.swapaxes(p.astype(f32), 0, 1)                 # (M, B)
    if B_pad > B:
        cT = jnp.pad(cT, ((0, 0), (0, B_pad - B), (0, 0)))
        pT = jnp.pad(pT, ((0, 0), (0, B_pad - B)))
    c_rows = cT.reshape(M * B_pad, K)
    p_rows = pT.reshape(M * B_pad, 1)

    # fused (and pre-negated) weights, shared across the grid
    W2neg = -jnp.concatenate([W2, tW2], axis=1).astype(f32)            # (K, Hd)
    W1cat = jnp.concatenate([W1, tW1], axis=0).astype(f32)             # (Hd, D)

    scal = jnp.array([epsilon], dtype=f32)                             # eps via SMEM

    grid = (n_btiles, M)  # objectives innermost -> per-batch blocks fetched once per tile

    def row_spec(width):
        return pl.BlockSpec((TB, width), lambda i, j: (j * n_btiles + i, 0))

    def batch_spec(width):
        return pl.BlockSpec((TB, width), lambda i, j: (i, 0))

    def full_spec(a):
        return pl.BlockSpec(a.shape, lambda i, j: (0, 0))

    in_specs = [
        pl.BlockSpec(memory_space=pltpu.MemorySpace.SMEM),   # eps scalar
        row_spec(K), row_spec(1),
        batch_spec(Hd), batch_spec(Hd), batch_spec(Hd),
        full_spec(W2neg), full_spec(W1cat),
    ]
    out_spec = pl.BlockSpec((TB, 1), lambda i, j: (j * n_btiles + i, 0))

    # explicit VMEM budget (lane-padded double-buffered blocks + weights + headroom),
    # capped at 48 MiB so the request stays comfortably valid on v7x's 64 MiB VMEM.
    def lane(n):
        return _round_up(max(n, 1), 128)
    blk_bytes = 4 * TB * (lane(K) + 2 * lane(1) + 3 * lane(Hd))
    w_bytes = 4 * (K * lane(Hd) + Hd * lane(D))
    vmem_limit = int(min(max(2 * (blk_bytes + w_bytes) + (8 << 20), 16 << 20), 48 << 20))

    kernel = functools.partial(_dual_tile_kernel, h_net=H, precision=matmul_precision)

    out = pl.pallas_call(
        kernel,
        grid=grid,
        in_specs=in_specs,
        out_specs=out_spec,
        out_shape=jax.ShapeDtypeStruct((M * B_pad, 1), f32),
        compiler_params=pltpu.CompilerParams(
            dimension_semantics=("parallel", "parallel"),
            vmem_limit_bytes=vmem_limit),
    )(scal, c_rows, p_rows, dcat, drcat, dzcat, W2neg, W1cat)

    obj = out.reshape(M, B_pad)[:, :B].T                   # (B, M)

    # constant terms that need no weights in the hot path:
    #   -nu0.b2 - p*nu0.tb2 + eta*p  ==  c.b2 + p*(c.tb2) + eta*p
    eta_f = 0.0 if eta is None else eta
    c32 = c.astype(f32)
    p32 = p.astype(f32)
    addc = (jnp.einsum('bmk,k->bm', c32, b2.astype(f32), precision=hp)
            + p32 * jnp.einsum('bmk,k->bm', c32, tb2.astype(f32), precision=hp)
            + eta_f * p32)
    return obj + addc

    # TODO(synk): RobustBounds-specific c = e_y - e_j admits replacing the first matmul
    # with a W2neg row gather (scalar-prefetch y); the generic-c MXU path is kept here.


# -----------------------------------------------------------------------------
# RobustBounds.forward for net = [Linear(D,H), ReLU, Linear(H,K)]:
#   c[b, j] = e_{y_b} - e_j,  f = -DualNetwork(net, X, eps)(c)
# (the single-net dual objective is the double objective with p = 0)
# -----------------------------------------------------------------------------
def robust_bounds_forward(X, y, net_params, epsilon, **kwargs):
    K = net_params[2].shape[0]
    B = X.shape[0]
    eye = jnp.eye(K, dtype=jnp.float32)
    c = eye[y][:, None, :] - eye[None, :, :]                # (B, K, K)
    p0 = jnp.zeros((B, K), jnp.float32)
    return -dual_network_double_forward(p0, c, X, net_params, net_params,
                                        epsilon, eta=None, **kwargs)

# TODO(synk): grad w.r.t. p / X uses torch.autograd in the original; wrap this forward
# in jax.grad instead.


# -----------------------------------------------------------------------------
# pure-JAX reference (mirrors the torch forward exactly)
# -----------------------------------------------------------------------------
def reference_forward(p, c, X, net_params, tnet_params, eps, eta=None):
    W1, b1, W2, b2 = net_params
    tW1, tb1, tW2, tb2 = tnet_params
    d1, zl1, I1, _ = relu_dual_params(X, W1, b1, eps)
    td1, tzl1, tI1, _ = relu_dual_params(X, tW1, tb1, eps)
    hp = jax.lax.Precision.HIGHEST

    nu0 = -c
    nu1 = jnp.einsum('bmk,kh->bmh', nu0, W2, precision=hp)
    nu2 = nu1 * d1[:, None, :]
    nu3 = jnp.einsum('bmh,hd->bmd', nu2, W1, precision=hp)
    q1 = jnp.einsum('bmk,kh->bmh', nu0, tW2, precision=hp)
    q2 = q1 * td1[:, None, :]
    q3 = jnp.einsum('bmh,hd->bmd', q2, tW1, precision=hp)

    s_net = (-(nu2 * b1).sum(-1)
             + (jnp.maximum(nu2, 0.0) * (zl1 * I1)[:, None, :]).sum(-1)
             - (nu0 * b2).sum(-1))
    s_t = (-(q2 * tb1).sum(-1)
           + (jnp.maximum(q2, 0.0) * (tzl1 * tI1)[:, None, :]).sum(-1)
           - (nu0 * tb2).sum(-1))
    v = nu3 + p[:, :, None] * q3
    o_in = -(v * X[:, None, :]).sum(-1) - eps * jnp.abs(v).sum(-1)
    appen = 0.0 if eta is None else eta * p
    return s_net + p * s_t + o_in + appen


if __name__ == "__main__":
    def make_net(key, D, H, K):
        f32 = jnp.float32
        ks = jax.random.split(key, 4)
        W1 = jax.random.normal(ks[0], (H, D), f32) / np.sqrt(D)
        b1 = 0.1 * jax.random.normal(ks[1], (H,), f32)
        W2 = jax.random.normal(ks[2], (K, H), f32) / np.sqrt(H)
        b2 = 0.1 * jax.random.normal(ks[3], (K,), f32)
        return W1, b1, W2, b2

    def run_case(seed, B, D, H, Ht, K, eps, eta, batch_tile=512):
        f32 = jnp.float32
        M = K
        key = jax.random.PRNGKey(seed)
        k_net, k_tnet, kx, ky, kp = jax.random.split(key, 5)
        net = make_net(k_net, D, H, K)
        tnet = make_net(k_tnet, D, Ht, K)

        # minibatch (think of a flattened NCHW image); RobustBounds-style objective
        # vectors c[b, j] = e_{y_b} - e_j  (M = K objectives per example)
        X = jax.random.uniform(kx, (B, D), f32)
        y = jax.random.randint(ky, (B,), 0, K)
        eye = jnp.eye(K, dtype=f32)
        c = eye[y][:, None, :] - eye[None, :, :]            # (B, M, K)
        p = jax.random.uniform(kp, (B, M), f32)

        out = dual_network_double_forward(p, c, X, net, tnet, eps, eta=eta,
                                          batch_tile=batch_tile)
        out = jax.block_until_ready(out)
        ref = reference_forward(p, c, X, net, tnet, eps, eta=eta)
        np.testing.assert_allclose(np.asarray(out), np.asarray(ref),
                                   rtol=1e-3, atol=2e-3)

        # RobustBounds.forward itself (single net, f = -J(c))
        f_rb = jax.block_until_ready(
            robust_bounds_forward(X, y, net, eps, batch_tile=batch_tile))
        f_ref = -reference_forward(jnp.zeros((B, K), f32), c, X, net, net, eps)
        np.testing.assert_allclose(np.asarray(f_rb), np.asarray(f_ref),
                                   rtol=1e-3, atol=2e-3)

    # small case: 2x1x8x8 image flattened to D=64, single batch tile, grid (1, 8)
    run_case(0, B=2, D=64, H=32, Ht=48, K=8, eps=0.1, eta=0.5)
    # larger case: Hd=160, D=128, one 40-row batch tile, 10-objective inner grid axis
    run_case(1, B=40, D=128, H=96, Ht=64, K=10, eps=0.05, eta=0.25)
    # multi-batch-tile + padding: B=22 -> 3 tiles of 8 rows (B_pad=24), grid (3, 10)
    run_case(2, B=22, D=128, H=64, Ht=32, K=10, eps=0.05, eta=0.1, batch_tile=8)

    print("KERNEL_OK")
</pallas_src>

<mosaic_0001>
module attributes {stable_mosaic.version = 11 : i64} {
  func.func @_dual_tile_kernel(%arg0: i32, %arg1: i32, %arg2: memref<1xf32, #tpu.memory_space<smem>>, %arg3: memref<8x8xf32, #tpu.memory_space<vmem>>, %arg4: memref<8x1xf32, #tpu.memory_space<vmem>>, %arg5: memref<8x80xf32, #tpu.memory_space<vmem>>, %arg6: memref<8x80xf32, #tpu.memory_space<vmem>>, %arg7: memref<8x80xf32, #tpu.memory_space<vmem>>, %arg8: memref<8x80xf32, #tpu.memory_space<vmem>>, %arg9: memref<80x64xf32, #tpu.memory_space<vmem>>, %arg10: memref<8x1xf32, #tpu.memory_space<vmem>>) attributes {dimension_semantics = [#tpu.dimension_semantics<parallel>, #tpu.dimension_semantics<parallel>], iteration_bounds = array<i64: 1, 8>, scalar_prefetch = 0 : i64, scratch_operands = 0 : i64, tpu.core_type = #tpu.core_type<tc>, window_params = [{transform_indices = @transform_0, window_bounds = array<i64: 1>}, {transform_indices = @transform_1, window_bounds = array<i64: 8, 8>}, {transform_indices = @transform_2, window_bounds = array<i64: 8, 1>}, {transform_indices = @transform_3, window_bounds = array<i64: 8, 80>}, {transform_indices = @transform_4, window_bounds = array<i64: 8, 80>}, {transform_indices = @transform_5, window_bounds = array<i64: 8, 80>}, {pipeline_mode = #tpu.pipeline_mode<synchronous>, transform_indices = @transform_6, window_bounds = array<i64: 8, 80>}, {pipeline_mode = #tpu.pipeline_mode<synchronous>, transform_indices = @transform_7, window_bounds = array<i64: 80, 64>}, {transform_indices = @transform_8, window_bounds = array<i64: 8, 1>}]} {
    %c0 = arith.constant 0 : index
    %0 = memref.load %arg2[%c0] : memref<1xf32, #tpu.memory_space<smem>>
    %c0_0 = arith.constant 0 : index
    %c0_1 = arith.constant 0 : index
    %1 = vector.load %arg3[%c0_0, %c0_1] : memref<8x8xf32, #tpu.memory_space<vmem>>, vector<8x8xf32>
    %c0_2 = arith.constant 0 : index
    %c0_3 = arith.constant 0 : index
    %2 = vector.load %arg8[%c0_2, %c0_3] : memref<8x80xf32, #tpu.memory_space<vmem>>, vector<8x80xf32>
    %cst = arith.constant dense<0.000000e+00> : vector<8x80xf32>
    %3 = tpu.matmul %1, %2, %cst {dimension_numbers = #tpu.dot_dimension_numbers<[1], [0], [0], [1], [0, 0, 1, 1], [], []>, precision = #tpu.contract_precision<fp32>} : vector<8x8xf32>, vector<8x80xf32>, vector<8x80xf32> -> vector<8x80xf32>
    %c0_4 = arith.constant 0 : index
    %c0_5 = arith.constant 0 : index
    %4 = vector.load %arg4[%c0_4, %c0_5] : memref<8x1xf32, #tpu.memory_space<vmem>>, vector<8x1xf32>
    %5 = tpu.iota {dimensions = array<i32: 1>} : vector<8x80xi32>
    %c32_i32 = arith.constant 32 : i32
    %6 = vector.broadcast %c32_i32 : i32 to vector<8x80xi32>
    %7 = arith.cmpi slt, %5, %6 : vector<8x80xi32>
    %cst_6 = arith.constant 1.000000e+00 : f32
    %8 = vector.broadcast %cst_6 : f32 to vector<8x80xf32>
    %9 = vector.shape_cast %4 : vector<8x1xf32> to vector<8x1xf32>
    %10 = vector.broadcast %9 : vector<8x1xf32> to vector<8x80xf32>
    %11 = arith.select %7, %8, %10 : vector<8x80xi1>, vector<8x80xf32>
    %cst_7 = arith.constant 0.000000e+00 : f32
    %12 = vector.broadcast %cst_7 : f32 to vector<8x80xf32>
    %13 = arith.maximumf %3, %12 : vector<8x80xf32>
    %c0_8 = arith.constant 0 : index
    %c0_9 = arith.constant 0 : index
    %14 = vector.load %arg6[%c0_8, %c0_9] : memref<8x80xf32, #tpu.memory_space<vmem>>, vector<8x80xf32>
    %15 = arith.mulf %13, %14 : vector<8x80xf32>
    %c0_10 = arith.constant 0 : index
    %c0_11 = arith.constant 0 : index
    %16 = vector.load %arg7[%c0_10, %c0_11] : memref<8x80xf32, #tpu.memory_space<vmem>>, vector<8x80xf32>
    %17 = arith.mulf %3, %16 : vector<8x80xf32>
    %18 = arith.subf %15, %17 : vector<8x80xf32>
    %19 = arith.mulf %18, %11 : vector<8x80xf32>
    %cst_12 = arith.constant dense<0.000000e+00> : vector<8xf32>
    %20 = vector.multi_reduction <add>, %19, %cst_12 [1] : vector<8x80xf32> to vector<8xf32>
    %21 = vector.shape_cast %20 : vector<8xf32> to vector<8x1xf32>
    %c0_13 = arith.constant 0 : index
    %c0_14 = arith.constant 0 : index
    %22 = vector.load %arg5[%c0_13, %c0_14] : memref<8x80xf32, #tpu.memory_space<vmem>>, vector<8x80xf32>
    %23 = arith.mulf %3, %22 : vector<8x80xf32>
    %24 = arith.mulf %23, %11 : vector<8x80xf32>
    %c0_15 = arith.constant 0 : index
    %c0_16 = arith.constant 0 : index
    %25 = vector.load %arg9[%c0_15, %c0_16] : memref<80x64xf32, #tpu.memory_space<vmem>>, vector<80x64xf32>
    %cst_17 = arith.constant dense<0.000000e+00> : vector<8x64xf32>
    %26 = tpu.matmul %24, %25, %cst_17 {dimension_numbers = #tpu.dot_dimension_numbers<[1], [0], [0], [1], [0, 0, 1, 1], [], []>, precision = #tpu.contract_precision<fp32>} : vector<8x80xf32>, vector<80x64xf32>, vector<8x64xf32> -> vector<8x64xf32>
    %27 = math.absf %26 : vector<8x64xf32>
    %cst_18 = arith.constant dense<0.000000e+00> : vector<8xf32>
    %28 = vector.multi_reduction <add>, %27, %cst_18 [1] : vector<8x64xf32> to vector<8xf32>
    %29 = vector.shape_cast %28 : vector<8xf32> to vector<8x1xf32>
    %30 = vector.broadcast %0 : f32 to vector<8x1xf32>
    %31 = arith.mulf %30, %29 : vector<8x1xf32>
    %32 = arith.subf %21, %31 : vector<8x1xf32>
    %c0_19 = arith.constant 0 : index
    %c0_20 = arith.constant 0 : index
    %33 = vector.load %arg10[%c0_19, %c0_20] : memref<8x1xf32, #tpu.memory_space<vmem>>, vector<8x1xf32>
    tpu.vector_store %arg10[%c0_19, %c0_20], %32 {strides = array<i32>} : memref<8x1xf32, #tpu.memory_space<vmem>>, vector<8x1xf32>,
    return
  }
  func.func @transform_0(%arg0: i32, %arg1: i32) -> i32 {
    %c0_i32 = arith.constant 0 : i32
    %c0_i32_0 = arith.constant 0 : i32
    return %c0_i32 : i32
  }
  func.func @transform_1(%arg0: i32, %arg1: i32) -> (i32, i32) {
    %c1_i32 = arith.constant 1 : i32
    %0 = arith.muli %arg1, %c1_i32 : i32
    %1 = arith.addi %0, %arg0 : i32
    %c0_i32 = arith.constant 0 : i32
    %c0_i32_0 = arith.constant 0 : i32
    return %1, %c0_i32 : i32, i32
  }
  func.func @transform_2(%arg0: i32, %arg1: i32) -> (i32, i32) {
    %c1_i32 = arith.constant 1 : i32
    %0 = arith.muli %arg1, %c1_i32 : i32
    %1 = arith.addi %0, %arg0 : i32
    %c0_i32 = arith.constant 0 : i32
    %c0_i32_0 = arith.constant 0 : i32
    return %1, %c0_i32 : i32, i32
  }
  func.func @transform_3(%arg0: i32, %arg1: i32) -> (i32, i32) {
    %c0_i32 = arith.constant 0 : i32
    %c0_i32_0 = arith.constant 0 : i32
    return %arg0, %c0_i32 : i32, i32
  }
  func.func @transform_4(%arg0: i32, %arg1: i32) -> (i32, i32) {
    %c0_i32 = arith.constant 0 : i32
    %c0_i32_0 = arith.constant 0 : i32
    return %arg0, %c0_i32 : i32, i32
  }
  func.func @transform_5(%arg0: i32, %arg1: i32) -> (i32, i32) {
    %c0_i32 = arith.constant 0 : i32
    %c0_i32_0 = arith.constant 0 : i32
    return %arg0, %c0_i32 : i32, i32
  }
  func.func @transform_6(%arg0: i32, %arg1: i32) -> (i32, i32) {
    %c0_i32 = arith.constant 0 : i32
    %c0_i32_0 = arith.constant 0 : i32
    %c0_i32_1 = arith.constant 0 : i32
    return %c0_i32, %c0_i32_0 : i32, i32
  }
  func.func @transform_7(%arg0: i32, %arg1: i32) -> (i32, i32) {
    %c0_i32 = arith.constant 0 : i32
    %c0_i32_0 = arith.constant 0 : i32
    %c0_i32_1 = arith.constant 0 : i32
    return %c0_i32, %c0_i32_0 : i32, i32
  }
  func.func @transform_8(%arg0: i32, %arg1: i32) -> (i32, i32) {
    %c1_i32 = arith.constant 1 : i32
    %0 = arith.muli %arg1, %c1_i32 : i32
    %1 = arith.addi %0, %arg0 : i32
    %c0_i32 = arith.constant 0 : i32
    %c0_i32_0 = arith.constant 0 : i32
    return %1, %c0_i32 : i32, i32
  }
}

</mosaic_0001>

<llo_original>
// kernel: tpu_custom_call.1
$region0: #{tpu_custom_call.1}
  #allocation0 [shape = 'u32[]', space=smem, size = 0x4, offset = 0x4, fixed_abs, tag = 'smem constant byte address 0x4 - core index']
  #allocation1 [shape = 'u32[144,128]{1,0:T(1,128)}', space=vmem, size = 0x12000, scoped, tag = 'internal scratch']
  #allocation2 [shape = 'f32[1]{0:T(128)S(6)}', space=smem, size = 0x200, scoped, tag = 'scoped memory for tpu_custom_call.1']
  %s0 = inlined_call_operand.<no memory space> [shape: f32[1], index: 0, kind: input, shape index: {}]
  %s1 = inlined_call_operand.vmem [shape: f32[64,8], index: 1, kind: input, shape index: {}]
  %s2 = inlined_call_operand.vmem [shape: f32[64,1], index: 2, kind: input, shape index: {}]
  %s3 = inlined_call_operand.vmem [shape: f32[8,80], index: 3, kind: input, shape index: {}]
  %s4 = inlined_call_operand.vmem [shape: f32[8,80], index: 4, kind: input, shape index: {}]
  %s5 = inlined_call_operand.vmem [shape: f32[8,80], index: 5, kind: input, shape index: {}]
  %s6 = inlined_call_operand.vmem [shape: f32[8,80], index: 6, kind: input, shape index: {}]
  %s7 = inlined_call_operand.vmem [shape: f32[80,64], index: 7, kind: input, shape index: {}]
  %s8 = inlined_call_operand.vmem [shape: f32[64,1], index: 8, kind: output, shape index: {}]
  %s9 = sld [smem:[#allocation0]]
  $region65: #{tpu_custom_call.1} parent=0
    _
  %s11 = ssub.s32 1, %s9
  %s12 = scalar_select 0, %s11, %s9
  %13 = sst [smem:[#allocation2]] %s0
  loop: start=0, step=1, limit=10
  $region2: #{tpu_custom_call.1} parent=0 // loop_pre_header
    _
  $region3: #{tpu_custom_call.1} parent=0 // loop_header
    %s15 = sphi 0, %s19
    %p16 = scmp.ge.s32.totalorder %s15, 10
    %s22 = sphi 0, %s34
    %s23 = sphi 0, %s30
    %s24 = sphi 0, %s22
    %s25 = sphi 0, %s23
    %s26 = sphi 0, %s24
    %s27 = sphi 0, %s25
    %s35 = sphi 0, %s35
    %s37 = sphi 0, %s35
    %s38 = sphi 0, %s37
    %s52 = sphi 0, %s38
    %s60 = sphi 0, %s62
    %s63 = sphi 0, %s60
    %s64 = sphi 0, %s63
    %s80 = sphi 0, %s64
    %s88 = sphi 0, %s90
    %s91 = sphi 0, %s88
    %s92 = sphi 0, %s91
    %s108 = sphi 0, %s92
    %s114 = sphi 0, %s116
    %s117 = sphi 0, %s114
    %s118 = sphi 0, %s117
    %s134 = sphi 0, %s118
    %s140 = sphi 0, %s142
    %s143 = sphi 0, %s140
    %s144 = sphi 0, %s143
    %s160 = sphi 0, %s144
    %s166 = sphi 0, %s168
    %s169 = sphi 0, %s166
    %s170 = sphi 0, %s169
    %s186 = sphi 0, %s170
    %s190 = sphi 0, %s190
    %s192 = sphi 0, %s190
    %s193 = sphi 0, %s192
    %s207 = sphi 0, %s193
    %s211 = sphi 0, %s211
    %s213 = sphi 0, %s211
    %s214 = sphi 0, %s213
    %s228 = sphi 0, %s214
    %s236 = sphi 0, %s238
    %s239 = sphi 0, %s236
    %s240 = sphi 0, %s239
    %s256 = sphi 0, %s240
  $region4: #{tpu_custom_call.1} parent=0 // loop_header_branch
    %18 = sbr.rel (%p16) target = $region8
  $region5: #{tpu_custom_call.1} parent=0 // loop_body
    %s20 = ssub.s32 %s15, 1
    %s21 = ssub.s32 %s15, 2
    %s28 = sadd.s32 1, %s23
    %p29 = scmp.ge.s32.totalorder %s28, 8
    %s30 = scalar_select %p29, 0, %s28
    %s31 = sadd.s32 1, %s22
    %s32 = scalar_select %p29, %s31, %s22
    %p33 = scmp.ge.s32.totalorder %s32, 1
    %s34 = scalar_select %p33, 0, %s32
    %s36 = sadd.s32 %s35, 1
    %p39 = scmp.eq.s32.totalorder %s15, 7
    %p40 = scmp.ne.s32.totalorder %s35, %s37
    %p41 = scmp.eq.s32.totalorder %s15, 0
    %p42 = por %p40, %p41
    %p43 = scmp.ne.s32.totalorder %s35, %s37
    %p44 = scmp.eq.s32.totalorder %s20, 7
    %p45 = por %p43, %p44
    %p46 = scmp.ne.s32.totalorder %s37, %s38
    %p47 = scmp.eq.s32.totalorder %s20, 0
    %p48 = por %p46, %p47
    %p49 = scmp.ne.s32.totalorder %s37, %s38
    %p50 = scmp.eq.s32.totalorder %s21, 7
    %p51 = por %p49, %p50
    %p53 = scmp.ne.s32.totalorder %s38, %s52
    %p54 = scmp.eq.s32.totalorder %s21, 0
    %p55 = por %p53, %p54
    %s56 = sadd.s32 %s23, %s22
    %s57 = sadd.s32 %s30, %s34
    %s58 = ssub.s32 %s56, %s57
    %p59 = scmp.eq.s32.totalorder %s58, 0
    %s61 = sadd.s32 %s60, 1
    %s62 = scalar_select %p59, %s60, %s61
    %p65 = pneg %p59
    %p66 = scmp.eq.s32.totalorder %s15, 7
    %p67 = por %p65, %p66
    %p68 = scmp.ne.s32.totalorder %s60, %s63
    %p69 = scmp.eq.s32.totalorder %s15, 0
    %p70 = por %p68, %p69
    %p71 = scmp.ne.s32.totalorder %s60, %s63
    %p72 = scmp.eq.s32.totalorder %s20, 7
    %p73 = por %p71, %p72
    %p74 = scmp.ne.s32.totalorder %s63, %s64
    %p75 = scmp.eq.s32.totalorder %s20, 0
    %p76 = por %p74, %p75
    %p77 = scmp.ne.s32.totalorder %s63, %s64
    %p78 = scmp.eq.s32.totalorder %s21, 7
    %p79 = por %p77, %p78
    %p81 = scmp.ne.s32.totalorder %s64, %s80
    %p82 = scmp.eq.s32.totalorder %s21, 0
    %p83 = por %p81, %p82
    %s84 = sadd.s32 %s23, %s22
    %s85 = sadd.s32 %s30, %s34
    %s86 = ssub.s32 %s84, %s85
    %p87 = scmp.eq.s32.totalorder %s86, 0
    %s89 = sadd.s32 %s88, 1
    %s90 = scalar_select %p87, %s88, %s89
    %p93 = pneg %p87
    %p94 = scmp.eq.s32.totalorder %s15, 7
    %p95 = por %p93, %p94
    %p96 = scmp.ne.s32.totalorder %s88, %s91
    %p97 = scmp.eq.s32.totalorder %s15, 0
    %p98 = por %p96, %p97
    %p99 = scmp.ne.s32.totalorder %s88, %s91
    %p100 = scmp.eq.s32.totalorder %s20, 7
    %p101 = por %p99, %p100
    %p102 = scmp.ne.s32.totalorder %s91, %s92
    %p103 = scmp.eq.s32.totalorder %s20, 0
    %p104 = por %p102, %p103
    %p105 = scmp.ne.s32.totalorder %s91, %s92
    %p106 = scmp.eq.s32.totalorder %s21, 7
    %p107 = por %p105, %p106
    %p109 = scmp.ne.s32.totalorder %s92, %s108
    %p110 = scmp.eq.s32.totalorder %s21, 0
    %p111 = por %p109, %p110
    %s112 = ssub.s32 %s22, %s34
    %p113 = scmp.eq.s32.totalorder %s112, 0
    %s115 = sadd.s32 %s114, 1
    %s116 = scalar_select %p113, %s114, %s115
    %p119 = pneg %p113
    %p120 = scmp.eq.s32.totalorder %s15, 7
    %p121 = por %p119, %p120
    %p122 = scmp.ne.s32.totalorder %s114, %s117
    %p123 = scmp.eq.s32.totalorder %s15, 0
    %p124 = por %p122, %p123
    %p125 = scmp.ne.s32.totalorder %s114, %s117
    %p126 = scmp.eq.s32.totalorder %s20, 7
    %p127 = por %p125, %p126
    %p128 = scmp.ne.s32.totalorder %s117, %s118
    %p129 = scmp.eq.s32.totalorder %s20, 0
    %p130 = por %p128, %p129
    %p131 = scmp.ne.s32.totalorder %s117, %s118
    %p132 = scmp.eq.s32.totalorder %s21, 7
    %p133 = por %p131, %p132
    %p135 = scmp.ne.s32.totalorder %s118, %s134
    %p136 = scmp.eq.s32.totalorder %s21, 0
    %p137 = por %p135, %p136
    %s138 = ssub.s32 %s22, %s34
    %p139 = scmp.eq.s32.totalorder %s138, 0
    %s141 = sadd.s32 %s140, 1
    %s142 = scalar_select %p139, %s140, %s141
    %p145 = pneg %p139
    %p146 = scmp.eq.s32.totalorder %s15, 7
    %p147 = por %p145, %p146
    %p148 = scmp.ne.s32.totalorder %s140, %s143
    %p149 = scmp.eq.s32.totalorder %s15, 0
    %p150 = por %p148, %p149
    %p151 = scmp.ne.s32.totalorder %s140, %s143
    %p152 = scmp.eq.s32.totalorder %s20, 7
    %p153 = por %p151, %p152
    %p154 = scmp.ne.s32.totalorder %s143, %s144
    %p155 = scmp.eq.s32.totalorder %s20, 0
    %p156 = por %p154, %p155
    %p157 = scmp.ne.s32.totalorder %s143, %s144
    %p158 = scmp.eq.s32.totalorder %s21, 7
    %p159 = por %p157, %p158
    %p161 = scmp.ne.s32.totalorder %s144, %s160
    %p162 = scmp.eq.s32.totalorder %s21, 0
    %p163 = por %p161, %p162
    %s164 = ssub.s32 %s22, %s34
    %p165 = scmp.eq.s32.totalorder %s164, 0
    %s167 = sadd.s32 %s166, 1
    %s168 = scalar_select %p165, %s166, %s167
    %p171 = pneg %p165
    %p172 = scmp.eq.s32.totalorder %s15, 7
    %p173 = por %p171, %p172
    %p174 = scmp.ne.s32.totalorder %s166, %s169
    %p175 = scmp.eq.s32.totalorder %s15, 0
    %p176 = por %p174, %p175
    %p177 = scmp.ne.s32.totalorder %s166, %s169
    %p178 = scmp.eq.s32.totalorder %s20, 7
    %p179 = por %p177, %p178
    %p180 = scmp.ne.s32.totalorder %s169, %s170
    %p181 = scmp.eq.s32.totalorder %s20, 0
    %p182 = por %p180, %p181
    %p183 = scmp.ne.s32.totalorder %s169, %s170
    %p184 = scmp.eq.s32.totalorder %s21, 7
    %p185 = por %p183, %p184
    %p187 = scmp.ne.s32.totalorder %s170, %s186
    %p188 = scmp.eq.s32.totalorder %s21, 0
    %p189 = por %p187, %p188
    %s191 = sadd.s32 %s190, 1
    %p194 = scmp.eq.s32.totalorder %s15, 7
    %p195 = scmp.ne.s32.totalorder %s190, %s192
    %p196 = scmp.eq.s32.totalorder %s15, 0
    %p197 = por %p195, %p196
    %p198 = scmp.ne.s32.totalorder %s190, %s192
    %p199 = scmp.eq.s32.totalorder %s20, 7
    %p200 = por %p198, %p199
    %p201 = scmp.ne.s32.totalorder %s192, %s193
    %p202 = scmp.eq.s32.totalorder %s20, 0
    %p203 = por %p201, %p202
    %p204 = scmp.ne.s32.totalorder %s192, %s193
    %p205 = scmp.eq.s32.totalorder %s21, 7
    %p206 = por %p204, %p205
    %p208 = scmp.ne.s32.totalorder %s193, %s207
    %p209 = scmp.eq.s32.totalorder %s21, 0
    %p210 = por %p208, %p209
    %s212 = sadd.s32 %s211, 1
    %p215 = scmp.eq.s32.totalorder %s15, 7
    %p216 = scmp.ne.s32.totalorder %s211, %s213
    %p217 = scmp.eq.s32.totalorder %s15, 0
    %p218 = por %p216, %p217
    %p219 = scmp.ne.s32.totalorder %s211, %s213
    %p220 = scmp.eq.s32.totalorder %s20, 7
    %p221 = por %p219, %p220
    %p222 = scmp.ne.s32.totalorder %s213, %s214
    %p223 = scmp.eq.s32.totalorder %s20, 0
    %p224 = por %p222, %p223
    %p225 = scmp.ne.s32.totalorder %s213, %s214
    %p226 = scmp.eq.s32.totalorder %s21, 7
    %p227 = por %p225, %p226
    %p229 = scmp.ne.s32.totalorder %s214, %s228
    %p230 = scmp.eq.s32.totalorder %s21, 0
    %p231 = por %p229, %p230
    %s232 = sadd.s32 %s23, %s22
    %s233 = sadd.s32 %s30, %s34
    %s234 = ssub.s32 %s232, %s233
    %p235 = scmp.eq.s32.totalorder %s234, 0
    %s237 = sadd.s32 %s236, 1
    %s238 = scalar_select %p235, %s236, %s237
    %p241 = pneg %p235
    %p242 = scmp.eq.s32.totalorder %s15, 7
    %p243 = por %p241, %p242
    %p244 = scmp.ne.s32.totalorder %s236, %s239
    %p245 = scmp.eq.s32.totalorder %s15, 0
    %p246 = por %p244, %p245
    %p247 = scmp.ne.s32.totalorder %s236, %s239
    %p248 = scmp.eq.s32.totalorder %s20, 7
    %p249 = por %p247, %p248
    %p250 = scmp.ne.s32.totalorder %s239, %s240
    %p251 = scmp.eq.s32.totalorder %s20, 0
    %p252 = por %p250, %p251
    %p253 = scmp.ne.s32.totalorder %s239, %s240
    %p254 = scmp.eq.s32.totalorder %s21, 7
    %p255 = por %p253, %p254
    %p257 = scmp.ne.s32.totalorder %s240, %s256
    %p258 = scmp.eq.s32.totalorder %s21, 0
    %p259 = por %p257, %p258
    %p260 = scmp.le.s32.totalorder 1, %s15
    %p261 = scmp.lt.s32.totalorder %s15, 9
    %p262 = pnand %p260, %p261
    %p263 = pneg %p262
    // Predicated region
    $region9: #{tpu_custom_call.1} parent=5 // pred_check
      _
    $region10: #{tpu_custom_call.1} parent=5 // pred_check_branch
      %265 = sbr.rel (%p262) target = $region12
    $region11: #{tpu_custom_call.1} parent=5 // pred_region
      %s266 = ssub.s32 %s15, 1
      // Predicated region
      $region13: #{tpu_custom_call.1} parent=11 // pred_check
        %p267 = pneg %p48
      $region14: #{tpu_custom_call.1} parent=11 // pred_check_branch
        %269 = sbr.rel (%p267) target = $region16
      $region15: #{tpu_custom_call.1} parent=11 // pred_region
        _
      $region16: #{tpu_custom_call.1} parent=11 // pred_fallthru
        _
      // Predicated region
      $region17: #{tpu_custom_call.1} parent=11 // pred_check
        %p270 = pneg %p130
      $region18: #{tpu_custom_call.1} parent=11 // pred_check_branch
        %272 = sbr.rel (%p270) target = $region20
      $region19: #{tpu_custom_call.1} parent=11 // pred_region
        %p273 = scmp.lt.s32.totalorder %s24, 0
        %s274 = scalar_select %p273, %s24, 0
        %s275 = smul.addr %s274, 8
        %s276 = scalar_lea.vmem %s3, %s275
      $region20: #{tpu_custom_call.1} parent=11 // pred_fallthru
        _
      // Predicated region
      $region21: #{tpu_custom_call.1} parent=11 // pred_check
        %p277 = pneg %p156
      $region22: #{tpu_custom_call.1} parent=11 // pred_check_branch
        %279 = sbr.rel (%p277) target = $region24
      $region23: #{tpu_custom_call.1} parent=11 // pred_region
        %p280 = scmp.lt.s32.totalorder %s24, 0
        %s281 = scalar_select %p280, %s24, 0
        %s282 = smul.addr %s281, 8
        %s283 = scalar_lea.vmem %s4, %s282
      $region24: #{tpu_custom_call.1} parent=11 // pred_fallthru
        _
      // Predicated region
      $region25: #{tpu_custom_call.1} parent=11 // pred_check
        %p284 = pneg %p182
      $region26: #{tpu_custom_call.1} parent=11 // pred_check_branch
        %286 = sbr.rel (%p284) target = $region28
      $region27: #{tpu_custom_call.1} parent=11 // pred_region
        %p287 = scmp.lt.s32.totalorder %s24, 0
        %s288 = scalar_select %p287, %s24, 0
        %s289 = smul.addr %s288, 8
        %s290 = scalar_lea.vmem %s5, %s289
      $region28: #{tpu_custom_call.1} parent=11 // pred_fallthru
        _
      // Predicated region
      $region29: #{tpu_custom_call.1} parent=11 // pred_check
        %p291 = pneg %p203
      $region30: #{tpu_custom_call.1} parent=11 // pred_check_branch
        %293 = sbr.rel (%p291) target = $region32
      $region31: #{tpu_custom_call.1} parent=11 // pred_region
        _
      $region32: #{tpu_custom_call.1} parent=11 // pred_fallthru
        _
      // Predicated region
      $region33: #{tpu_custom_call.1} parent=11 // pred_check
        %p294 = pneg %p224
      $region34: #{tpu_custom_call.1} parent=11 // pred_check_branch
        %296 = sbr.rel (%p294) target = $region36
      $region35: #{tpu_custom_call.1} parent=11 // pred_region
        _
      $region36: #{tpu_custom_call.1} parent=11 // pred_fallthru
        _
    $region12: #{tpu_custom_call.1} parent=5 // pred_fallthru
      _
    %p297 = scmp.lt.s32.totalorder %s15, 8
    // Predicated region
    $region37: #{tpu_custom_call.1} parent=5 // pred_check
      %p298 = pneg %p297
    $region38: #{tpu_custom_call.1} parent=5 // pred_check_branch
      %300 = sbr.rel (%p298) target = $region40
    $region39: #{tpu_custom_call.1} parent=5 // pred_region
      // Predicated region
      $region41: #{tpu_custom_call.1} parent=39 // pred_check
        %p301 = pneg %p70
      $region42: #{tpu_custom_call.1} parent=39 // pred_check_branch
        %303 = sbr.rel (%p301) target = $region44
      $region43: #{tpu_custom_call.1} parent=39 // pred_region
        %s304 = sadd.s32 %s23, %s22
        %p305 = scmp.lt.s32.totalorder %s304, 7
        %s306 = scalar_select %p305, %s304, 7
        %s307 = smul.addr %s306, 8
        %s308 = scalar_lea.vmem %s1, %s307
        %s309 = sadd.s32 %s23, %s22
      $region44: #{tpu_custom_call.1} parent=39 // pred_fallthru
        _
      // Predicated region
      $region45: #{tpu_custom_call.1} parent=39 // pred_check
        %p310 = pneg %p98
      $region46: #{tpu_custom_call.1} parent=39 // pred_check_branch
        %312 = sbr.rel (%p310) target = $region48
      $region47: #{tpu_custom_call.1} parent=39 // pred_region
        %s313 = sadd.s32 %s23, %s22
        %p314 = scmp.lt.s32.totalorder %s313, 7
        %s315 = scalar_select %p314, %s313, 7
        %s316 = smul.addr %s315, 8
        %s317 = scalar_lea.vmem %s2, %s316
        %s318 = sadd.s32 %s23, %s22
      $region48: #{tpu_custom_call.1} parent=39 // pred_fallthru
        _
    $region40: #{tpu_custom_call.1} parent=5 // pred_fallthru
      _
    %p319 = scmp.le.s32.totalorder 1, %s15
    %p320 = scmp.lt.s32.totalorder %s15, 9
    %p321 = pnand %p319, %p320
    %p322 = pneg %p321
    // Predicated region
    $region49: #{tpu_custom_call.1} parent=5 // pred_check
      _
    $region50: #{tpu_custom_call.1} parent=5 // pred_check_branch
      %324 = sbr.rel (%p321) target = $region52
    $region51: #{tpu_custom_call.1} parent=5 // pred_region
      %s325 = ssub.s32 %s15, 1
      %p326 = pneg %p48
      %p327 = pneg %p45
      %s328 = sadd.s32 %s25, %s24
      %p329 = scmp.lt.s32.totalorder %s328, 7
      %s330 = scalar_select %p329, %s328, 7
      %s331 = smul.addr %s330, 8
      %s332 = scalar_lea.vmem %s1, %s331
      %p333 = pneg %p76
      %p334 = pneg %p73
      %s335 = sadd.s32 %s25, %s24
      %p336 = scmp.lt.s32.totalorder %s335, 7
      %s337 = scalar_select %p336, %s335, 7
      %s338 = smul.addr %s337, 8
      %s339 = scalar_lea.vmem %s2, %s338
      %p340 = pneg %p104
      %p341 = pneg %p101
      %p342 = scmp.lt.s32.totalorder %s24, 0
      %s343 = scalar_select %p342, %s24, 0
      %s344 = smul.addr %s343, 8
      %s345 = scalar_lea.vmem %s3, %s344
      %p346 = pneg %p130
      %p347 = pneg %p127
      %p348 = scmp.lt.s32.totalorder %s24, 0
      %s349 = scalar_select %p348, %s24, 0
      %s350 = smul.addr %s349, 8
      %s351 = scalar_lea.vmem %s4, %s350
      %p352 = pneg %p156
      %p353 = pneg %p153
      %p354 = scmp.lt.s32.totalorder %s24, 0
      %s355 = scalar_select %p354, %s24, 0
      %s356 = smul.addr %s355, 8
      %s357 = scalar_lea.vmem %s5, %s356
      %p358 = pneg %p182
      %p359 = pneg %p179
      %p360 = pneg %p203
      %p361 = pneg %p200
      %p362 = pneg %p224
      %p363 = pneg %p221
      %p364 = pneg %p252
      %p365 = pneg %p249
      %s366 = sadd.s32 %s25, %s24
      %p367 = scmp.lt.s32.totalorder %s366, 7
      %s368 = scalar_select %p367, %s366, 7
      %s369 = smul.addr %s368, 8
      %s370 = scalar_lea.vmem %s8, %s369
      %s371 = sadd.s32 %s25, %s24
      %p372 = scmp.lt.s32.totalorder %s371, 7
      %s373 = scalar_select %p372, %s371, 7
      %s374 = smul.addr %s373, 8
      %s375 = scalar_lea.vmem %s1, %s374
      %s376 = sadd.s32 %s25, %s24
      %s377 = sadd.s32 %s25, %s24
      %p378 = scmp.lt.s32.totalorder %s377, 7
      %s379 = scalar_select %p378, %s377, 7
      %s380 = smul.addr %s379, 8
      %s381 = scalar_lea.vmem %s2, %s380
      %s382 = sadd.s32 %s25, %s24
      %p383 = scmp.lt.s32.totalorder %s24, 0
      %s384 = scalar_select %p383, %s24, 0
      %s385 = smul.addr %s384, 8
      %s386 = scalar_lea.vmem %s3, %s385
      %p387 = scmp.lt.s32.totalorder %s24, 0
      %s388 = scalar_select %p387, %s24, 0
      %s389 = smul.addr %s388, 8
      %s390 = scalar_lea.vmem %s4, %s389
      %p391 = scmp.lt.s32.totalorder %s24, 0
      %s392 = scalar_select %p391, %s24, 0
      %s393 = smul.addr %s392, 8
      %s394 = scalar_lea.vmem %s5, %s393
      %s395 = sadd.s32 %s25, %s24
      %p396 = scmp.lt.s32.totalorder %s395, 7
      %s397 = scalar_select %p396, %s395, 7
      %s398 = smul.addr %s397, 8
      %s399 = scalar_lea.vmem %s8, %s398
      %s400 = sadd.s32 %s25, %s24
      %s401 = sld [smem:[#allocation2]]
      %v402 = vld [vmem:[%s375] sm:$0xff]
      %v403 = vld [vmem:[%s6] sm:$0xff]
      %vm404 = vcmask 64512
      %v406 = vsel %vm404, %v402, 0
      %408 = vmatprep.subr.mxu0 0.0
      %v409 = vand.u32 %v403, 4294901760
      %410 = vmatpush1.msra.mxu0 %v409
      %411 = vmatprep.subr.mxu0 0.0
      %412 = vmatpush1.msra.mxu0 0.0
      %413 = vmatprep.subr.mxu0 0.0
      %414 = vmatpush1.msra.mxu0 0.0
      %415 = vmatprep.subr.mxu0 0.0
      %416 = vmatpush1.msra.mxu0 0.0
      %417 = vmatprep.subr.mxu0 0.0
      %418 = vmatpush1.msra.mxu0 0.0
      %419 = vmatprep.subr.mxu0 0.0
      %420 = vmatpush1.msra.mxu0 0.0
      %421 = vmatprep.subr.mxu0 0.0
      %422 = vmatpush1.msra.mxu0 0.0
      %423 = vmatprep.subr.mxu0 0.0
      %424 = vmatpush1.msra.mxu0 0.0
      %425 = vmatprep.subr.mxu0 0.0
      %426 = vmatpush1.msra.mxu0 0.0
      %427 = vmatprep.subr.mxu0 0.0
      %428 = vmatpush1.msra.mxu0 0.0
      %429 = vmatprep.subr.mxu0 0.0
      %430 = vmatpush1.msra.mxu0 0.0
      %431 = vmatprep.subr.mxu0 0.0
      %432 = vmatpush1.msra.mxu0 0.0
      %433 = vmatprep.subr.mxu0 0.0
      %434 = vmatpush1.msra.mxu0 0.0
      %435 = vmatprep.subr.mxu0 0.0
      %436 = vmatpush1.msra.mxu0 0.0
      %437 = vmatprep.subr.mxu0 0.0
      %438 = vmatpush1.msra.mxu0 0.0
      %439 = vmatprep.subr.mxu0 0.0
      %440 = vmatpush1.msra.mxu0 0.0
      %441 = vmatprep.subr.mxu0 0.0
      %442 = vmatpush1.msra.mxu0 0.0
      %443 = vmatprep.subr.mxu0 0.0
      %444 = vmatpush1.msra.mxu0 0.0
      %445 = vmatprep.subr.mxu0 0.0
      %446 = vmatpush1.msra.mxu0 0.0
      %447 = vmatprep.subr.mxu0 0.0
      %448 = vmatpush1.msra.mxu0 0.0
      %449 = vmatprep.subr.mxu0 0.0
      %450 = vmatpush1.msra.mxu0 0.0
      %451 = vmatprep.subr.mxu0 0.0
      %452 = vmatpush1.msra.mxu0 0.0
      %453 = vmatprep.subr.mxu0 0.0
      %454 = vmatpush1.msra.mxu0 0.0
      %455 = vmatprep.subr.mxu0 0.0
      %456 = vmatpush1.msra.mxu0 0.0
      %457 = vmatprep.subr.mxu0 0.0
      %458 = vmatpush1.msra.mxu0 0.0
      %459 = vmatprep.subr.mxu0 0.0
      %460 = vmatpush1.msra.mxu0 0.0
      %461 = vmatprep.subr.mxu0 0.0
      %462 = vmatpush1.msra.mxu0 0.0
      %463 = vmatprep.subr.mxu0 0.0
      %464 = vmatpush1.msra.mxu0 0.0
      %465 = vmatprep.subr.mxu0 0.0
      %466 = vmatpush1.msra.mxu0 0.0
      %467 = vmatprep.subr.mxu0 0.0
      %468 = vmatpush1.msra.mxu0 0.0
      %469 = vmatprep.subr.mxu0 0.0
      %470 = vmatpush1.msra.mxu0 0.0
      %471 = vmatprep.subr.mxu0 0.0
      %472 = vmatpush1.msra.mxu0 0.0
      %473 = vmatprep.mubr.f32.mxu0 0.0
      %v474 = vand.u32 %v406, 4294901760
      %v475 = vsub.f32 %v406, %v474
      %v476 = vand.u32 %v475, 4294901760
      %v477 = vsub.f32 %v475, %v476
      %v478 = vand.u32 %v477, 4294901760
      %479 = vmatmul.mubr.f32.gmra.mrb[0].mxu0 %v478
      %v480 = vpop.f32.mrb[0].mxu0
      %v481 = vadd.f32 0.0, %v480
      %v482 = vpop.f32.mrb[0].mxu0
      %483 = vdwg.mxu0
      %484 = vmatprep.subr.mxu0 0.0
      %v485 = vand.u32 %v403, 4294901760
      %v486 = vsub.f32 %v403, %v485
      %v487 = vand.u32 %v486, 4294901760
      %v488 = vsub.f32 %v486, %v487
      %v489 = vand.u32 %v488, 4294901760
      %490 = vmatpush1.msra.mxu0 %v489
      %491 = vmatprep.subr.mxu0 0.0
      %492 = vmatpush1.msra.mxu0 0.0
      %493 = vmatprep.subr.mxu0 0.0
      %494 = vmatpush1.msra.mxu0 0.0
      %495 = vmatprep.subr.mxu0 0.0
      %496 = vmatpush1.msra.mxu0 0.0
      %497 = vmatprep.subr.mxu0 0.0
      %498 = vmatpush1.msra.mxu0 0.0
      %499 = vmatprep.subr.mxu0 0.0
      %500 = vmatpush1.msra.mxu0 0.0
      %501 = vmatprep.subr.mxu0 0.0
      %502 = vmatpush1.msra.mxu0 0.0
      %503 = vmatprep.subr.mxu0 0.0
      %504 = vmatpush1.msra.mxu0 0.0
      %505 = vmatprep.subr.mxu0 0.0
      %506 = vmatpush1.msra.mxu0 0.0
      %507 = vmatprep.subr.mxu0 0.0
      %508 = vmatpush1.msra.mxu0 0.0
      %509 = vmatprep.subr.mxu0 0.0
      %510 = vmatpush1.msra.mxu0 0.0
      %511 = vmatprep.subr.mxu0 0.0
      %512 = vmatpush1.msra.mxu0 0.0
      %513 = vmatprep.subr.mxu0 0.0
      %514 = vmatpush1.msra.mxu0 0.0
      %515 = vmatprep.subr.mxu0 0.0
      %516 = vmatpush1.msra.mxu0 0.0
      %517 = vmatprep.subr.mxu0 0.0
      %518 = vmatpush1.msra.mxu0 0.0
      %519 = vmatprep.subr.mxu0 0.0
      %520 = vmatpush1.msra.mxu0 0.0
      %521 = vmatprep.subr.mxu0 0.0
      %522 = vmatpush1.msra.mxu0 0.0
      %523 = vmatprep.subr.mxu0 0.0
      %524 = vmatpush1.msra.mxu0 0.0
      %525 = vmatprep.subr.mxu0 0.0
      %526 = vmatpush1.msra.mxu0 0.0
      %527 = vmatprep.subr.mxu0 0.0
      %528 = vmatpush1.msra.mxu0 0.0
      %529 = vmatprep.subr.mxu0 0.0
      %530 = vmatpush1.msra.mxu0 0.0
      %531 = vmatprep.subr.mxu0 0.0
      %532 = vmatpush1.msra.mxu0 0.0
      %533 = vmatprep.subr.mxu0 0.0
      %534 = vmatpush1.msra.mxu0 0.0
      %535 = vmatprep.subr.mxu0 0.0
      %536 = vmatpush1.msra.mxu0 0.0
      %537 = vmatprep.subr.mxu0 0.0
      %538 = vmatpush1.msra.mxu0 0.0
      %539 = vmatprep.subr.mxu0 0.0
      %540 = vmatpush1.msra.mxu0 0.0
      %541 = vmatprep.subr.mxu0 0.0
      %542 = vmatpush1.msra.mxu0 0.0
      %543 = vmatprep.subr.mxu0 0.0
      %544 = vmatpush1.msra.mxu0 0.0
      %545 = vmatprep.subr.mxu0 0.0
      %546 = vmatpush1.msra.mxu0 0.0
      %547 = vmatprep.subr.mxu0 0.0
      %548 = vmatpush1.msra.mxu0 0.0
      %549 = vmatprep.subr.mxu0 0.0
      %550 = vmatpush1.msra.mxu0 0.0
      %551 = vmatprep.subr.mxu0 0.0
      %552 = vmatpush1.msra.mxu0 0.0
      %553 = vmatprep.mubr.f32.mxu0 0.0
      %v554 = vand.u32 %v406, 4294901760
      %555 = vmatmul.mubr.f32.gmra.mrb[0].mxu0 %v554
      %v556 = vpop.f32.mrb[0].mxu0
      %v557 = vadd.f32 %v481, %v556
      %v558 = vpop.f32.mrb[0].mxu0
      %559 = vdwg.mxu0
      %560 = vmatprep.subr.mxu0 0.0
      %v561 = vand.u32 %v403, 4294901760
      %v562 = vsub.f32 %v403, %v561
      %563 = vmatpush1.msra.mxu0 %v562
      %564 = vmatprep.subr.mxu0 0.0
      %565 = vmatpush1.msra.mxu0 0.0
      %566 = vmatprep.subr.mxu0 0.0
      %567 = vmatpush1.msra.mxu0 0.0
      %568 = vmatprep.subr.mxu0 0.0
      %569 = vmatpush1.msra.mxu0 0.0
      %570 = vmatprep.subr.mxu0 0.0
      %571 = vmatpush1.msra.mxu0 0.0
      %572 = vmatprep.subr.mxu0 0.0
      %573 = vmatpush1.msra.mxu0 0.0
      %574 = vmatprep.subr.mxu0 0.0
      %575 = vmatpush1.msra.mxu0 0.0
      %576 = vmatprep.subr.mxu0 0.0
      %577 = vmatpush1.msra.mxu0 0.0
      %578 = vmatprep.subr.mxu0 0.0
      %579 = vmatpush1.msra.mxu0 0.0
      %580 = vmatprep.subr.mxu0 0.0
      %581 = vmatpush1.msra.mxu0 0.0
      %582 = vmatprep.subr.mxu0 0.0
      %583 = vmatpush1.msra.mxu0 0.0
      %584 = vmatprep.subr.mxu0 0.0
      %585 = vmatpush1.msra.mxu0 0.0
      %586 = vmatprep.subr.mxu0 0.0
      %587 = vmatpush1.msra.mxu0 0.0
      %588 = vmatprep.subr.mxu0 0.0
      %589 = vmatpush1.msra.mxu0 0.0
      %590 = vmatprep.subr.mxu0 0.0
      %591 = vmatpush1.msra.mxu0 0.0
      %592 = vmatprep.subr.mxu0 0.0
      %593 = vmatpush1.msra.mxu0 0.0
      %594 = vmatprep.subr.mxu0 0.0
      %595 = vmatpush1.msra.mxu0 0.0
      %596 = vmatprep.subr.mxu0 0.0
      %597 = vmatpush1.msra.mxu0 0.0
      %598 = vmatprep.subr.mxu0 0.0
      %599 = vmatpush1.msra.mxu0 0.0
      %600 = vmatprep.subr.mxu0 0.0
      %601 = vmatpush1.msra.mxu0 0.0
      %602 = vmatprep.subr.mxu0 0.0
      %603 = vmatpush1.msra.mxu0 0.0
      %604 = vmatprep.subr.mxu0 0.0
      %605 = vmatpush1.msra.mxu0 0.0
      %606 = vmatprep.subr.mxu0 0.0
      %607 = vmatpush1.msra.mxu0 0.0
      %608 = vmatprep.subr.mxu0 0.0
      %609 = vmatpush1.msra.mxu0 0.0
      %610 = vmatprep.subr.mxu0 0.0
      %611 = vmatpush1.msra.mxu0 0.0
      %612 = vmatprep.subr.mxu0 0.0
      %613 = vmatpush1.msra.mxu0 0.0
      %614 = vmatprep.subr.mxu0 0.0
      %615 = vmatpush1.msra.mxu0 0.0
      %616 = vmatprep.subr.mxu0 0.0
      %617 = vmatpush1.msra.mxu0 0.0
      %618 = vmatprep.subr.mxu0 0.0
      %619 = vmatpush1.msra.mxu0 0.0
      %620 = vmatprep.subr.mxu0 0.0
      %621 = vmatpush1.msra.mxu0 0.0
      %622 = vmatprep.subr.mxu0 0.0
      %623 = vmatpush1.msra.mxu0 0.0
      %624 = vmatprep.subr.mxu0 0.0
      %625 = vmatpush1.msra.mxu0 0.0
      %626 = vmatprep.mubr.f32.mxu0 0.0
      %v627 = vand.u32 %v406, 4294901760
      %v628 = vsub.f32 %v406, %v627
      %629 = vmatmul.mubr.f32.gmra.mrb[0].mxu0 %v628
      %v630 = vpop.f32.mrb[0].mxu0
      %v631 = vadd.f32 %v557, %v630
      %v632 = vpop.f32.mrb[0].mxu0
      %633 = vdwg.mxu0
      %634 = vmatprep.subr.mxu0 0.0
      %v635 = vand.u32 %v403, 4294901760
      %636 = vmatpush1.msra.mxu0 %v635
      %637 = vmatprep.subr.mxu0 0.0
      %638 = vmatpush1.msra.mxu0 0.0
      %639 = vmatprep.subr.mxu0 0.0
      %640 = vmatpush1.msra.mxu0 0.0
      %641 = vmatprep.subr.mxu0 0.0
      %642 = vmatpush1.msra.mxu0 0.0
      %643 = vmatprep.subr.mxu0 0.0
      %644 = vmatpush1.msra.mxu0 0.0
      %645 = vmatprep.subr.mxu0 0.0
      %646 = vmatpush1.msra.mxu0 0.0
      %647 = vmatprep.subr.mxu0 0.0
      %648 = vmatpush1.msra.mxu0 0.0
      %649 = vmatprep.subr.mxu0 0.0
      %650 = vmatpush1.msra.mxu0 0.0
      %651 = vmatprep.subr.mxu0 0.0
      %652 = vmatpush1.msra.mxu0 0.0
      %653 = vmatprep.subr.mxu0 0.0
      %654 = vmatpush1.msra.mxu0 0.0
      %655 = vmatprep.subr.mxu0 0.0
      %656 = vmatpush1.msra.mxu0 0.0
      %657 = vmatprep.subr.mxu0 0.0
      %658 = vmatpush1.msra.mxu0 0.0
      %659 = vmatprep.subr.mxu0 0.0
      %660 = vmatpush1.msra.mxu0 0.0
      %661 = vmatprep.subr.mxu0 0.0
      %662 = vmatpush1.msra.mxu0 0.0
      %663 = vmatprep.subr.mxu0 0.0
      %664 = vmatpush1.msra.mxu0 0.0
      %665 = vmatprep.subr.mxu0 0.0
      %666 = vmatpush1.msra.mxu0 0.0
      %667 = vmatprep.subr.mxu0 0.0
      %668 = vmatpush1.msra.mxu0 0.0
      %669 = vmatprep.subr.mxu0 0.0
      %670 = vmatpush1.msra.mxu0 0.0
      %671 = vmatprep.subr.mxu0 0.0
      %672 = vmatpush1.msra.mxu0 0.0
      %673 = vmatprep.subr.mxu0 0.0
      %674 = vmatpush1.msra.mxu0 0.0
      %675 = vmatprep.subr.mxu0 0.0
      %676 = vmatpush1.msra.mxu0 0.0
      %677 = vmatprep.subr.mxu0 0.0
      %678 = vmatpush1.msra.mxu0 0.0
      %679 = vmatprep.subr.mxu0 0.0
      %680 = vmatpush1.msra.mxu0 0.0
      %681 = vmatprep.subr.mxu0 0.0
      %682 = vmatpush1.msra.mxu0 0.0
      %683 = vmatprep.subr.mxu0 0.0
      %684 = vmatpush1.msra.mxu0 0.0
      %685 = vmatprep.subr.mxu0 0.0
      %686 = vmatpush1.msra.mxu0 0.0
      %687 = vmatprep.subr.mxu0 0.0
      %688 = vmatpush1.msra.mxu0 0.0
      %689 = vmatprep.subr.mxu0 0.0
      %690 = vmatpush1.msra.mxu0 0.0
      %691 = vmatprep.subr.mxu0 0.0
      %692 = vmatpush1.msra.mxu0 0.0
      %693 = vmatprep.subr.mxu0 0.0
      %694 = vmatpush1.msra.mxu0 0.0
      %695 = vmatprep.subr.mxu0 0.0
      %696 = vmatpush1.msra.mxu0 0.0
      %697 = vmatprep.subr.mxu0 0.0
      %698 = vmatpush1.msra.mxu0 0.0
      %699 = vmatprep.mubr.f32.mxu0 0.0
      %v700 = vand.u32 %v406, 4294901760
      %v701 = vsub.f32 %v406, %v700
      %v702 = vand.u32 %v701, 4294901760
      %703 = vmatmul.mubr.f32.gmra.mrb[0].mxu0 %v702
      %v704 = vpop.f32.mrb[0].mxu0
      %v705 = vadd.f32 %v631, %v704
      %v706 = vpop.f32.mrb[0].mxu0
      %707 = vdwg.mxu0
      %708 = vmatprep.subr.mxu0 0.0
      %v709 = vand.u32 %v403, 4294901760
      %v710 = vsub.f32 %v403, %v709
      %v711 = vand.u32 %v710, 4294901760
      %712 = vmatpush1.msra.mxu0 %v711
      %713 = vmatprep.subr.mxu0 0.0
      %714 = vmatpush1.msra.mxu0 0.0
      %715 = vmatprep.subr.mxu0 0.0
      %716 = vmatpush1.msra.mxu0 0.0
      %717 = vmatprep.subr.mxu0 0.0
      %718 = vmatpush1.msra.mxu0 0.0
      %719 = vmatprep.subr.mxu0 0.0
      %720 = vmatpush1.msra.mxu0 0.0
      %721 = vmatprep.subr.mxu0 0.0
      %722 = vmatpush1.msra.mxu0 0.0
      %723 = vmatprep.subr.mxu0 0.0
      %724 = vmatpush1.msra.mxu0 0.0
      %725 = vmatprep.subr.mxu0 0.0
      %726 = vmatpush1.msra.mxu0 0.0
      %727 = vmatprep.subr.mxu0 0.0
      %728 = vmatpush1.msra.mxu0 0.0
      %729 = vmatprep.subr.mxu0 0.0
      %730 = vmatpush1.msra.mxu0 0.0
      %731 = vmatprep.subr.mxu0 0.0
      %732 = vmatpush1.msra.mxu0 0.0
      %733 = vmatprep.subr.mxu0 0.0
      %734 = vmatpush1.msra.mxu0 0.0
      %735 = vmatprep.subr.mxu0 0.0
      %736 = vmatpush1.msra.mxu0 0.0
      %737 = vmatprep.subr.mxu0 0.0
      %738 = vmatpush1.msra.mxu0 0.0
      %739 = vmatprep.subr.mxu0 0.0
      %740 = vmatpush1.msra.mxu0 0.0
      %741 = vmatprep.subr.mxu0 0.0
      %742 = vmatpush1.msra.mxu0 0.0
      %743 = vmatprep.subr.mxu0 0.0
      %744 = vmatpush1.msra.mxu0 0.0
      %745 = vmatprep.subr.mxu0 0.0
      %746 = vmatpush1.msra.mxu0 0.0
      %747 = vmatprep.subr.mxu0 0.0
      %748 = vmatpush1.msra.mxu0 0.0
      %749 = vmatprep.subr.mxu0 0.0
      %750 = vmatpush1.msra.mxu0 0.0
      %751 = vmatprep.subr.mxu0 0.0
      %752 = vmatpush1.msra.mxu0 0.0
      %753 = vmatprep.subr.mxu0 0.0
      %754 = vmatpush1.msra.mxu0 0.0
      %755 = vmatprep.subr.mxu0 0.0
      %756 = vmatpush1.msra.mxu0 0.0
      %757 = vmatprep.subr.mxu0 0.0
      %758 = vmatpush1.msra.mxu0 0.0
      %759 = vmatprep.subr.mxu0 0.0
      %760 = vmatpush1.msra.mxu0 0.0
      %761 = vmatprep.subr.mxu0 0.0
      %762 = vmatpush1.msra.mxu0 0.0
      %763 = vmatprep.subr.mxu0 0.0
      %764 = vmatpush1.msra.mxu0 0.0
      %765 = vmatprep.subr.mxu0 0.0
      %766 = vmatpush1.msra.mxu0 0.0
      %767 = vmatprep.subr.mxu0 0.0
      %768 = vmatpush1.msra.mxu0 0.0
      %769 = vmatprep.subr.mxu0 0.0
      %770 = vmatpush1.msra.mxu0 0.0
      %771 = vmatprep.subr.mxu0 0.0
      %772 = vmatpush1.msra.mxu0 0.0
      %773 = vmatprep.subr.mxu0 0.0
      %774 = vmatpush1.msra.mxu0 0.0
      %775 = vmatprep.mubr.f32.mxu0 0.0
      %v776 = vand.u32 %v406, 4294901760
      %777 = vmatmul.mubr.f32.gmra.mrb[0].mxu0 %v776
      %v778 = vpop.f32.mrb[0].mxu0
      %v779 = vadd.f32 %v705, %v778
      %v780 = vpop.f32.mrb[0].mxu0
      %781 = vdwg.mxu0
      %782 = vmatprep.subr.mxu0 0.0
      %v783 = vand.u32 %v403, 4294901760
      %784 = vmatpush1.msra.mxu0 %v783
      %785 = vmatprep.subr.mxu0 0.0
      %786 = vmatpush1.msra.mxu0 0.0
      %787 = vmatprep.subr.mxu0 0.0
      %788 = vmatpush1.msra.mxu0 0.0
      %789 = vmatprep.subr.mxu0 0.0
      %790 = vmatpush1.msra.mxu0 0.0
      %791 = vmatprep.subr.mxu0 0.0
      %792 = vmatpush1.msra.mxu0 0.0
      %793 = vmatprep.subr.mxu0 0.0
      %794 = vmatpush1.msra.mxu0 0.0
      %795 = vmatprep.subr.mxu0 0.0
      %796 = vmatpush1.msra.mxu0 0.0
      %797 = vmatprep.subr.mxu0 0.0
      %798 = vmatpush1.msra.mxu0 0.0
      %799 = vmatprep.subr.mxu0 0.0
      %800 = vmatpush1.msra.mxu0 0.0
      %801 = vmatprep.subr.mxu0 0.0
      %802 = vmatpush1.msra.mxu0 0.0
      %803 = vmatprep.subr.mxu0 0.0
      %804 = vmatpush1.msra.mxu0 0.0
      %805 = vmatprep.subr.mxu0 0.0
      %806 = vmatpush1.msra.mxu0 0.0
      %807 = vmatprep.subr.mxu0 0.0
      %808 = vmatpush1.msra.mxu0 0.0
      %809 = vmatprep.subr.mxu0 0.0
      %810 = vmatpush1.msra.mxu0 0.0
      %811 = vmatprep.subr.mxu0 0.0
      %812 = vmatpush1.msra.mxu0 0.0
      %813 = vmatprep.subr.mxu0 0.0
      %814 = vmatpush1.msra.mxu0 0.0
      %815 = vmatprep.subr.mxu0 0.0
      %816 = vmatpush1.msra.mxu0 0.0
      %817 = vmatprep.subr.mxu0 0.0
      %818 = vmatpush1.msra.mxu0 0.0
      %819 = vmatprep.subr.mxu0 0.0
      %820 = vmatpush1.msra.mxu0 0.0
      %821 = vmatprep.subr.mxu0 0.0
      %822 = vmatpush1.msra.mxu0 0.0
      %823 = vmatprep.subr.mxu0 0.0
      %824 = vmatpush1.msra.mxu0 0.0
      %825 = vmatprep.subr.mxu0 0.0
      %826 = vmatpush1.msra.mxu0 0.0
      %827 = vmatprep.subr.mxu0 0.0
      %828 = vmatpush1.msra.mxu0 0.0
      %829 = vmatprep.subr.mxu0 0.0
      %830 = vmatpush1.msra.mxu0 0.0
      %831 = vmatprep.subr.mxu0 0.0
      %832 = vmatpush1.msra.mxu0 0.0
      %833 = vmatprep.subr.mxu0 0.0
      %834 = vmatpush1.msra.mxu0 0.0
      %835 = vmatprep.subr.mxu0 0.0
      %836 = vmatpush1.msra.mxu0 0.0
      %837 = vmatprep.subr.mxu0 0.0
      %838 = vmatpush1.msra.mxu0 0.0
      %839 = vmatprep.subr.mxu0 0.0
      %840 = vmatpush1.msra.mxu0 0.0
      %841 = vmatprep.subr.mxu0 0.0
      %842 = vmatpush1.msra.mxu0 0.0
      %843 = vmatprep.subr.mxu0 0.0
      %844 = vmatpush1.msra.mxu0 0.0
      %845 = vmatprep.subr.mxu0 0.0
      %846 = vmatpush1.msra.mxu0 0.0
      %847 = vmatprep.mubr.f32.mxu0 0.0
      %v848 = vand.u32 %v406, 4294901760
      %849 = vmatmul.mubr.f32.gmra.mrb[0].mxu0 %v848
      %v850 = vpop.f32.mrb[0].mxu0
      %v851 = vadd.f32 %v779, %v850
      %v852 = vpop.f32.mrb[0].mxu0
      %853 = vdwg.mxu0
      %v854 = vld [vmem:[%s381] sm:$0xff]
      %v855 = vlaneseq
      %v856 = vand.u32 %v855, 127
      %vm857 = vcmp.lt.s32.totalorder %v856, 32
      %859 = vset.pattern.permute.xlu0 0
      %860 = vperm.xlu0 %859, %v854
      %v861 = vpop.permute.xlu0 %860
      %v863 = vsel %vm857, 1.0, %v861
      %v864 = vmax.f32 %v851, 0.0
      %v865 = vld [vmem:[%s390] sm:$0xff]
      %v866 = vmul.f32 %v864, %v865
      %v867 = vld [vmem:[%s394] sm:$0xff]
      %v868 = vmul.f32 %v851, %v867
      %v869 = vsub.f32 %v866, %v868
      %v870 = vmul.f32 %v869, %v863
      %vm871 = vcmask 654336
      %v872 = vsel %vm871, %v870, 0.0
      %873 = vadd.xlane.f32.xlu0 %v872
      %v874 = vpop.xlane.xlu0 %873
      %v875 = vld [vmem:[%s386] sm:$0xff]
      %v876 = vmul.f32 %v851, %v875
      %v877 = vmul.f32 %v876, %v863
      %v878 = vld [vmem:[%s7] sm:$0xff]
      %v879 = vld [vmem:[%s7 + $0x8] sm:$0xff]
      %v880 = vld [vmem:[%s7 + $0x10] sm:$0xff]
      %v881 = vld [vmem:[%s7 + $0x18] sm:$0xff]
      %v882 = vld [vmem:[%s7 + $0x20] sm:$0xff]
      %v883 = vld [vmem:[%s7 + $0x28] sm:$0xff]
      %v884 = vld [vmem:[%s7 + $0x30] sm:$0xff]
      %v885 = vld [vmem:[%s7 + $0x38] sm:$0xff]
      %v886 = vld [vmem:[%s7 + $0x40] sm:$0xff]
      %v887 = vld [vmem:[%s7 + $0x48] sm:$0xff]
      %v889 = vsel %vm871, %v877, 0
      %891 = vmatprep.subr.mxu0 0.0
      %v892 = vand.u32 %v878, 4294901760
      %893 = vmatpush1.msra.mxu0 %v892
      %894 = vmatprep.subr.mxu0 0.0
      %v895 = vand.u32 %v879, 4294901760
      %896 = vmatpush1.msra.mxu0 %v895
      %897 = vmatprep.subr.mxu0 0.0
      %v898 = vand.u32 %v880, 4294901760
      %899 = vmatpush1.msra.mxu0 %v898
      %900 = vmatprep.subr.mxu0 0.0
      %v901 = vand.u32 %v881, 4294901760
      %902 = vmatpush1.msra.mxu0 %v901
      %903 = vmatprep.subr.mxu0 0.0
      %v904 = vand.u32 %v882, 4294901760
      %905 = vmatpush1.msra.mxu0 %v904
      %906 = vmatprep.subr.mxu0 0.0
      %v907 = vand.u32 %v883, 4294901760
      %908 = vmatpush1.msra.mxu0 %v907
      %909 = vmatprep.subr.mxu0 0.0
      %v910 = vand.u32 %v884, 4294901760
      %911 = vmatpush1.msra.mxu0 %v910
      %912 = vmatprep.subr.mxu0 0.0
      %v913 = vand.u32 %v885, 4294901760
      %914 = vmatpush1.msra.mxu0 %v913
      %915 = vmatprep.subr.mxu0 0.0
      %v916 = vand.u32 %v886, 4294901760
      %917 = vmatpush1.msra.mxu0 %v916
      %918 = vmatprep.subr.mxu0 0.0
      %v919 = vand.u32 %v887, 4294901760
      %920 = vmatpush1.msra.mxu0 %v919
      %921 = vmatprep.subr.mxu0 0.0
      %922 = vmatpush1.msra.mxu0 0.0
      %923 = vmatprep.subr.mxu0 0.0
      %924 = vmatpush1.msra.mxu0 0.0
      %925 = vmatprep.subr.mxu0 0.0
      %926 = vmatpush1.msra.mxu0 0.0
      %927 = vmatprep.subr.mxu0 0.0
      %928 = vmatpush1.msra.mxu0 0.0
      %929 = vmatprep.subr.mxu0 0.0
      %930 = vmatpush1.msra.mxu0 0.0
      %931 = vmatprep.subr.mxu0 0.0
      %932 = vmatpush1.msra.mxu0 0.0
      %933 = vmatprep.subr.mxu0 0.0
      %934 = vmatpush1.msra.mxu0 0.0
      %935 = vmatprep.subr.mxu0 0.0
      %936 = vmatpush1.msra.mxu0 0.0
      %937 = vmatprep.subr.mxu0 0.0
      %938 = vmatpush1.msra.mxu0 0.0
      %939 = vmatprep.subr.mxu0 0.0
      %940 = vmatpush1.msra.mxu0 0.0
      %941 = vmatprep.subr.mxu0 0.0
      %942 = vmatpush1.msra.mxu0 0.0
      %943 = vmatprep.subr.mxu0 0.0
      %944 = vmatpush1.msra.mxu0 0.0
      %945 = vmatprep.subr.mxu0 0.0
      %946 = vmatpush1.msra.mxu0 0.0
      %947 = vmatprep.subr.mxu0 0.0
      %948 = vmatpush1.msra.mxu0 0.0
      %949 = vmatprep.subr.mxu0 0.0
      %950 = vmatpush1.msra.mxu0 0.0
      %951 = vmatprep.subr.mxu0 0.0
      %952 = vmatpush1.msra.mxu0 0.0
      %953 = vmatprep.subr.mxu0 0.0
      %954 = vmatpush1.msra.mxu0 0.0
      %955 = vmatprep.subr.mxu0 0.0
      %956 = vmatpush1.msra.mxu0 0.0
      %957 = vmatprep.subr.mxu0 0.0
      %958 = vmatpush1.msra.mxu0 0.0
      %959 = vmatprep.subr.mxu0 0.0
      %960 = vmatpush1.msra.mxu0 0.0
      %961 = vmatprep.subr.mxu0 0.0
      %962 = vmatpush1.msra.mxu0 0.0
      %963 = vmatprep.subr.mxu0 0.0
      %964 = vmatpush1.msra.mxu0 0.0
      %965 = vmatprep.mubr.f32.mxu0 0.0
      %v966 = vand.u32 %v889, 4294901760
      %v967 = vsub.f32 %v889, %v966
      %v968 = vand.u32 %v967, 4294901760
      %v969 = vsub.f32 %v967, %v968
      %v970 = vand.u32 %v969, 4294901760
      %971 = vmatmul.mubr.f32.gmra.mrb[0].mxu0 %v970
      %v972 = vpop.f32.mrb[0].mxu0
      %v973 = vadd.f32 0.0, %v972
      %v974 = vpop.f32.mrb[0].mxu0
      %975 = vdwg.mxu0
      %976 = vmatprep.subr.mxu0 0.0
      %v977 = vand.u32 %v878, 4294901760
      %v978 = vsub.f32 %v878, %v977
      %v979 = vand.u32 %v978, 4294901760
      %v980 = vsub.f32 %v978, %v979
      %v981 = vand.u32 %v980, 4294901760
      %982 = vmatpush1.msra.mxu0 %v981
      %983 = vmatprep.subr.mxu0 0.0
      %v984 = vand.u32 %v879, 4294901760
      %v985 = vsub.f32 %v879, %v984
      %v986 = vand.u32 %v985, 4294901760
      %v987 = vsub.f32 %v985, %v986
      %v988 = vand.u32 %v987, 4294901760
      %989 = vmatpush1.msra.mxu0 %v988
      %990 = vmatprep.subr.mxu0 0.0
      %v991 = vand.u32 %v880, 4294901760
      %v992 = vsub.f32 %v880, %v991
      %v993 = vand.u32 %v992, 4294901760
      %v994 = vsub.f32 %v992, %v993
      %v995 = vand.u32 %v994, 4294901760
      %996 = vmatpush1.msra.mxu0 %v995
      %997 = vmatprep.subr.mxu0 0.0
      %v998 = vand.u32 %v881, 4294901760
      %v999 = vsub.f32 %v881, %v998
      %v1000 = vand.u32 %v999, 4294901760
      %v1001 = vsub.f32 %v999, %v1000
      %v1002 = vand.u32 %v1001, 4294901760
      %1003 = vmatpush1.msra.mxu0 %v1002
      %1004 = vmatprep.subr.mxu0 0.0
      %v1005 = vand.u32 %v882, 4294901760
      %v1006 = vsub.f32 %v882, %v1005
      %v1007 = vand.u32 %v1006, 4294901760
      %v1008 = vsub.f32 %v1006, %v1007
      %v1009 = vand.u32 %v1008, 4294901760
      %1010 = vmatpush1.msra.mxu0 %v1009
      %1011 = vmatprep.subr.mxu0 0.0
      %v1012 = vand.u32 %v883, 4294901760
      %v1013 = vsub.f32 %v883, %v1012
      %v1014 = vand.u32 %v1013, 4294901760
      %v1015 = vsub.f32 %v1013, %v1014
      %v1016 = vand.u32 %v1015, 4294901760
      %1017 = vmatpush1.msra.mxu0 %v1016
      %1018 = vmatprep.subr.mxu0 0.0
      %v1019 = vand.u32 %v884, 4294901760
      %v1020 = vsub.f32 %v884, %v1019
      %v1021 = vand.u32 %v1020, 4294901760
      %v1022 = vsub.f32 %v1020, %v1021
      %v1023 = vand.u32 %v1022, 4294901760
      %1024 = vmatpush1.msra.mxu0 %v1023
      %1025 = vmatprep.subr.mxu0 0.0
      %v1026 = vand.u32 %v885, 4294901760
      %v1027 = vsub.f32 %v885, %v1026
      %v1028 = vand.u32 %v1027, 4294901760
      %v1029 = vsub.f32 %v1027, %v1028
      %v1030 = vand.u32 %v1029, 4294901760
      %1031 = vmatpush1.msra.mxu0 %v1030
      %1032 = vmatprep.subr.mxu0 0.0
      %v1033 = vand.u32 %v886, 4294901760
      %v1034 = vsub.f32 %v886, %v1033
      %v1035 = vand.u32 %v1034, 4294901760
      %v1036 = vsub.f32 %v1034, %v1035
      %v1037 = vand.u32 %v1036, 4294901760
      %1038 = vmatpush1.msra.mxu0 %v1037
      %1039 = vmatprep.subr.mxu0 0.0
      %v1040 = vand.u32 %v887, 4294901760
      %v1041 = vsub.f32 %v887, %v1040
      %v1042 = vand.u32 %v1041, 4294901760
      %v1043 = vsub.f32 %v1041, %v1042
      %v1044 = vand.u32 %v1043, 4294901760
      %1045 = vmatpush1.msra.mxu0 %v1044
      %1046 = vmatprep.subr.mxu0 0.0
      %1047 = vmatpush1.msra.mxu0 0.0
      %1048 = vmatprep.subr.mxu0 0.0
      %1049 = vmatpush1.msra.mxu0 0.0
      %1050 = vmatprep.subr.mxu0 0.0
      %1051 = vmatpush1.msra.mxu0 0.0
      %1052 = vmatprep.subr.mxu0 0.0
      %1053 = vmatpush1.msra.mxu0 0.0
      %1054 = vmatprep.subr.mxu0 0.0
      %1055 = vmatpush1.msra.mxu0 0.0
      %1056 = vmatprep.subr.mxu0 0.0
      %1057 = vmatpush1.msra.mxu0 0.0
      %1058 = vmatprep.subr.mxu0 0.0
      %1059 = vmatpush1.msra.mxu0 0.0
      %1060 = vmatprep.subr.mxu0 0.0
      %1061 = vmatpush1.msra.mxu0 0.0
      %1062 = vmatprep.subr.mxu0 0.0
      %1063 = vmatpush1.msra.mxu0 0.0
      %1064 = vmatprep.subr.mxu0 0.0
      %1065 = vmatpush1.msra.mxu0 0.0
      %1066 = vmatprep.subr.mxu0 0.0
      %1067 = vmatpush1.msra.mxu0 0.0
      %1068 = vmatprep.subr.mxu0 0.0
      %1069 = vmatpush1.msra.mxu0 0.0
      %1070 = vmatprep.subr.mxu0 0.0
      %1071 = vmatpush1.msra.mxu0 0.0
      %1072 = vmatprep.subr.mxu0 0.0
      %1073 = vmatpush1.msra.mxu0 0.0
      %1074 = vmatprep.subr.mxu0 0.0
      %1075 = vmatpush1.msra.mxu0 0.0
      %1076 = vmatprep.subr.mxu0 0.0
      %1077 = vmatpush1.msra.mxu0 0.0
      %1078 = vmatprep.subr.mxu0 0.0
      %1079 = vmatpush1.msra.mxu0 0.0
      %1080 = vmatprep.subr.mxu0 0.0
      %1081 = vmatpush1.msra.mxu0 0.0
      %1082 = vmatprep.subr.mxu0 0.0
      %1083 = vmatpush1.msra.mxu0 0.0
      %1084 = vmatprep.subr.mxu0 0.0
      %1085 = vmatpush1.msra.mxu0 0.0
      %1086 = vmatprep.subr.mxu0 0.0
      %1087 = vmatpush1.msra.mxu0 0.0
      %1088 = vmatprep.subr.mxu0 0.0
      %1089 = vmatpush1.msra.mxu0 0.0
      %1090 = vmatprep.mubr.f32.mxu0 0.0
      %v1091 = vand.u32 %v889, 4294901760
      %1092 = vmatmul.mubr.f32.gmra.mrb[0].mxu0 %v1091
      %v1093 = vpop.f32.mrb[0].mxu0
      %v1094 = vadd.f32 %v973, %v1093
      %v1095 = vpop.f32.mrb[0].mxu0
      %1096 = vdwg.mxu0
      %1097 = vmatprep.subr.mxu0 0.0
      %v1098 = vand.u32 %v878, 4294901760
      %v1099 = vsub.f32 %v878, %v1098
      %1100 = vmatpush1.msra.mxu0 %v1099
      %1101 = vmatprep.subr.mxu0 0.0
      %v1102 = vand.u32 %v879, 4294901760
      %v1103 = vsub.f32 %v879, %v1102
      %1104 = vmatpush1.msra.mxu0 %v1103
      %1105 = vmatprep.subr.mxu0 0.0
      %v1106 = vand.u32 %v880, 4294901760
      %v1107 = vsub.f32 %v880, %v1106
      %1108 = vmatpush1.msra.mxu0 %v1107
      %1109 = vmatprep.subr.mxu0 0.0
      %v1110 = vand.u32 %v881, 4294901760
      %v1111 = vsub.f32 %v881, %v1110
      %1112 = vmatpush1.msra.mxu0 %v1111
      %1113 = vmatprep.subr.mxu0 0.0
      %v1114 = vand.u32 %v882, 4294901760
      %v1115 = vsub.f32 %v882, %v1114
      %1116 = vmatpush1.msra.mxu0 %v1115
      %1117 = vmatprep.subr.mxu0 0.0
      %v1118 = vand.u32 %v883, 4294901760
      %v1119 = vsub.f32 %v883, %v1118
      %1120 = vmatpush1.msra.mxu0 %v1119
      %1121 = vmatprep.subr.mxu0 0.0
      %v1122 = vand.u32 %v884, 4294901760
      %v1123 = vsub.f32 %v884, %v1122
      %1124 = vmatpush1.msra.mxu0 %v1123
      %1125 = vmatprep.subr.mxu0 0.0
      %v1126 = vand.u32 %v885, 4294901760
      %v1127 = vsub.f32 %v885, %v1126
      %1128 = vmatpush1.msra.mxu0 %v1127
      %1129 = vmatprep.subr.mxu0 0.0
      %v1130 = vand.u32 %v886, 4294901760
      %v1131 = vsub.f32 %v886, %v1130
      %1132 = vmatpush1.msra.mxu0 %v1131
      %1133 = vmatprep.subr.mxu0 0.0
      %v1134 = vand.u32 %v887, 4294901760
      %v1135 = vsub.f32 %v887, %v1134
      %1136 = vmatpush1.msra.mxu0 %v1135
      %1137 = vmatprep.subr.mxu0 0.0
      %1138 = vmatpush1.msra.mxu0 0.0
      %1139 = vmatprep.subr.mxu0 0.0
      %1140 = vmatpush1.msra.mxu0 0.0
      %1141 = vmatprep.subr.mxu0 0.0
      %1142 = vmatpush1.msra.mxu0 0.0
      %1143 = vmatprep.subr.mxu0 0.0
      %1144 = vmatpush1.msra.mxu0 0.0
      %1145 = vmatprep.subr.mxu0 0.0
      %1146 = vmatpush1.msra.mxu0 0.0
      %1147 = vmatprep.subr.mxu0 0.0
      %1148 = vmatpush1.msra.mxu0 0.0
      %1149 = vmatprep.subr.mxu0 0.0
      %1150 = vmatpush1.msra.mxu0 0.0
      %1151 = vmatprep.subr.mxu0 0.0
      %1152 = vmatpush1.msra.mxu0 0.0
      %1153 = vmatprep.subr.mxu0 0.0
      %1154 = vmatpush1.msra.mxu0 0.0
      %1155 = vmatprep.subr.mxu0 0.0
      %1156 = vmatpush1.msra.mxu0 0.0
      %1157 = vmatprep.subr.mxu0 0.0
      %1158 = vmatpush1.msra.mxu0 0.0
      %1159 = vmatprep.subr.mxu0 0.0
      %1160 = vmatpush1.msra.mxu0 0.0
      %1161 = vmatprep.subr.mxu0 0.0
      %1162 = vmatpush1.msra.mxu0 0.0
      %1163 = vmatprep.subr.mxu0 0.0
      %1164 = vmatpush1.msra.mxu0 0.0
      %1165 = vmatprep.subr.mxu0 0.0
      %1166 = vmatpush1.msra.mxu0 0.0
      %1167 = vmatprep.subr.mxu0 0.0
      %1168 = vmatpush1.msra.mxu0 0.0
      %1169 = vmatprep.subr.mxu0 0.0
      %1170 = vmatpush1.msra.mxu0 0.0
      %1171 = vmatprep.subr.mxu0 0.0
      %1172 = vmatpush1.msra.mxu0 0.0
      %1173 = vmatprep.subr.mxu0 0.0
      %1174 = vmatpush1.msra.mxu0 0.0
      %1175 = vmatprep.subr.mxu0 0.0
      %1176 = vmatpush1.msra.mxu0 0.0
      %1177 = vmatprep.subr.mxu0 0.0
      %1178 = vmatpush1.msra.mxu0 0.0
      %1179 = vmatprep.subr.mxu0 0.0
      %1180 = vmatpush1.msra.mxu0 0.0
      %1181 = vmatprep.mubr.f32.mxu0 0.0
      %v1182 = vand.u32 %v889, 4294901760
      %v1183 = vsub.f32 %v889, %v1182
      %1184 = vmatmul.mubr.f32.gmra.mrb[0].mxu0 %v1183
      %v1185 = vpop.f32.mrb[0].mxu0
      %v1186 = vadd.f32 %v1094, %v1185
      %v1187 = vpop.f32.mrb[0].mxu0
      %1188 = vdwg.mxu0
      %1189 = vmatprep.subr.mxu0 0.0
      %v1190 = vand.u32 %v878, 4294901760
      %1191 = vmatpush1.msra.mxu0 %v1190
      %1192 = vmatprep.subr.mxu0 0.0
      %v1193 = vand.u32 %v879, 4294901760
      %1194 = vmatpush1.msra.mxu0 %v1193
      %1195 = vmatprep.subr.mxu0 0.0
      %v1196 = vand.u32 %v880, 4294901760
      %1197 = vmatpush1.msra.mxu0 %v1196
      %1198 = vmatprep.subr.mxu0 0.0
      %v1199 = vand.u32 %v881, 4294901760
      %1200 = vmatpush1.msra.mxu0 %v1199
      %1201 = vmatprep.subr.mxu0 0.0
      %v1202 = vand.u32 %v882, 4294901760
      %1203 = vmatpush1.msra.mxu0 %v1202
      %1204 = vmatprep.subr.mxu0 0.0
      %v1205 = vand.u32 %v883, 4294901760
      %1206 = vmatpush1.msra.mxu0 %v1205
      %1207 = vmatprep.subr.mxu0 0.0
      %v1208 = vand.u32 %v884, 4294901760
      %1209 = vmatpush1.msra.mxu0 %v1208
      %1210 = vmatprep.subr.mxu0 0.0
      %v1211 = vand.u32 %v885, 4294901760
      %1212 = vmatpush1.msra.mxu0 %v1211
      %1213 = vmatprep.subr.mxu0 0.0
      %v1214 = vand.u32 %v886, 4294901760
      %1215 = vmatpush1.msra.mxu0 %v1214
      %1216 = vmatprep.subr.mxu0 0.0
      %v1217 = vand.u32 %v887, 4294901760
      %1218 = vmatpush1.msra.mxu0 %v1217
      %1219 = vmatprep.subr.mxu0 0.0
      %1220 = vmatpush1.msra.mxu0 0.0
      %1221 = vmatprep.subr.mxu0 0.0
      %1222 = vmatpush1.msra.mxu0 0.0
      %1223 = vmatprep.subr.mxu0 0.0
      %1224 = vmatpush1.msra.mxu0 0.0
      %1225 = vmatprep.subr.mxu0 0.0
      %1226 = vmatpush1.msra.mxu0 0.0
      %1227 = vmatprep.subr.mxu0 0.0
      %1228 = vmatpush1.msra.mxu0 0.0
      %1229 = vmatprep.subr.mxu0 0.0
      %1230 = vmatpush1.msra.mxu0 0.0
      %1231 = vmatprep.subr.mxu0 0.0
      %1232 = vmatpush1.msra.mxu0 0.0
      %1233 = vmatprep.subr.mxu0 0.0
      %1234 = vmatpush1.msra.mxu0 0.0
      %1235 = vmatprep.subr.mxu0 0.0
      %1236 = vmatpush1.msra.mxu0 0.0
      %1237 = vmatprep.subr.mxu0 0.0
      %1238 = vmatpush1.msra.mxu0 0.0
      %1239 = vmatprep.subr.mxu0 0.0
      %1240 = vmatpush1.msra.mxu0 0.0
      %1241 = vmatprep.subr.mxu0 0.0
      %1242 = vmatpush1.msra.mxu0 0.0
      %1243 = vmatprep.subr.mxu0 0.0
      %1244 = vmatpush1.msra.mxu0 0.0
      %1245 = vmatprep.subr.mxu0 0.0
      %1246 = vmatpush1.msra.mxu0 0.0
      %1247 = vmatprep.subr.mxu0 0.0
      %1248 = vmatpush1.msra.mxu0 0.0
      %1249 = vmatprep.subr.mxu0 0.0
      %1250 = vmatpush1.msra.mxu0 0.0
      %1251 = vmatprep.subr.mxu0 0.0
      %1252 = vmatpush1.msra.mxu0 0.0
      %1253 = vmatprep.subr.mxu0 0.0
      %1254 = vmatpush1.msra.mxu0 0.0
      %1255 = vmatprep.subr.mxu0 0.0
      %1256 = vmatpush1.msra.mxu0 0.0
      %1257 = vmatprep.subr.mxu0 0.0
      %1258 = vmatpush1.msra.mxu0 0.0
      %1259 = vmatprep.subr.mxu0 0.0
      %1260 = vmatpush1.msra.mxu0 0.0
      %1261 = vmatprep.subr.mxu0 0.0
      %1262 = vmatpush1.msra.mxu0 0.0
      %1263 = vmatprep.mubr.f32.mxu0 0.0
      %v1264 = vand.u32 %v889, 4294901760
      %v1265 = vsub.f32 %v889, %v1264
      %v1266 = vand.u32 %v1265, 4294901760
      %1267 = vmatmul.mubr.f32.gmra.mrb[0].mxu0 %v1266
      %v1268 = vpop.f32.mrb[0].mxu0
      %v1269 = vadd.f32 %v1186, %v1268
      %v1270 = vpop.f32.mrb[0].mxu0
      %1271 = vdwg.mxu0
      %1272 = vmatprep.subr.mxu0 0.0
      %v1273 = vand.u32 %v878, 4294901760
      %v1274 = vsub.f32 %v878, %v1273
      %v1275 = vand.u32 %v1274, 4294901760
      %1276 = vmatpush1.msra.mxu0 %v1275
      %1277 = vmatprep.subr.mxu0 0.0
      %v1278 = vand.u32 %v879, 4294901760
      %v1279 = vsub.f32 %v879, %v1278
      %v1280 = vand.u32 %v1279, 4294901760
      %1281 = vmatpush1.msra.mxu0 %v1280
      %1282 = vmatprep.subr.mxu0 0.0
      %v1283 = vand.u32 %v880, 4294901760
      %v1284 = vsub.f32 %v880, %v1283
      %v1285 = vand.u32 %v1284, 4294901760
      %1286 = vmatpush1.msra.mxu0 %v1285
      %1287 = vmatprep.subr.mxu0 0.0
      %v1288 = vand.u32 %v881, 4294901760
      %v1289 = vsub.f32 %v881, %v1288
      %v1290 = vand.u32 %v1289, 4294901760
      %1291 = vmatpush1.msra.mxu0 %v1290
      %1292 = vmatprep.subr.mxu0 0.0
      %v1293 = vand.u32 %v882, 4294901760
      %v1294 = vsub.f32 %v882, %v1293
      %v1295 = vand.u32 %v1294, 4294901760
      %1296 = vmatpush1.msra.mxu0 %v1295
      %1297 = vmatprep.subr.mxu0 0.0
      %v1298 = vand.u32 %v883, 4294901760
      %v1299 = vsub.f32 %v883, %v1298
      %v1300 = vand.u32 %v1299, 4294901760
      %1301 = vmatpush1.msra.mxu0 %v1300
      %1302 = vmatprep.subr.mxu0 0.0
      %v1303 = vand.u32 %v884, 4294901760
      %v1304 = vsub.f32 %v884, %v1303
      %v1305 = vand.u32 %v1304, 4294901760
      %1306 = vmatpush1.msra.mxu0 %v1305
      %1307 = vmatprep.subr.mxu0 0.0
      %v1308 = vand.u32 %v885, 4294901760
      %v1309 = vsub.f32 %v885, %v1308
      %v1310 = vand.u32 %v1309, 4294901760
      %1311 = vmatpush1.msra.mxu0 %v1310
      %1312 = vmatprep.subr.mxu0 0.0
      %v1313 = vand.u32 %v886, 4294901760
      %v1314 = vsub.f32 %v886, %v1313
      %v1315 = vand.u32 %v1314, 4294901760
      %1316 = vmatpush1.msra.mxu0 %v1315
      %1317 = vmatprep.subr.mxu0 0.0
      %v1318 = vand.u32 %v887, 4294901760
      %v1319 = vsub.f32 %v887, %v1318
      %v1320 = vand.u32 %v1319, 4294901760
      %1321 = vmatpush1.msra.mxu0 %v1320
      %1322 = vmatprep.subr.mxu0 0.0
      %1323 = vmatpush1.msra.mxu0 0.0
      %1324 = vmatprep.subr.mxu0 0.0
      %1325 = vmatpush1.msra.mxu0 0.0
      %1326 = vmatprep.subr.mxu0 0.0
      %1327 = vmatpush1.msra.mxu0 0.0
      %1328 = vmatprep.subr.mxu0 0.0
      %1329 = vmatpush1.msra.mxu0 0.0
      %1330 = vmatprep.subr.mxu0 0.0
      %1331 = vmatpush1.msra.mxu0 0.0
      %1332 = vmatprep.subr.mxu0 0.0
      %1333 = vmatpush1.msra.mxu0 0.0
      %1334 = vmatprep.subr.mxu0 0.0
      %1335 = vmatpush1.msra.mxu0 0.0
      %1336 = vmatprep.subr.mxu0 0.0
      %1337 = vmatpush1.msra.mxu0 0.0
      %1338 = vmatprep.subr.mxu0 0.0
      %1339 = vmatpush1.msra.mxu0 0.0
      %1340 = vmatprep.subr.mxu0 0.0
      %1341 = vmatpush1.msra.mxu0 0.0
      %1342 = vmatprep.subr.mxu0 0.0
      %1343 = vmatpush1.msra.mxu0 0.0
      %1344 = vmatprep.subr.mxu0 0.0
      %1345 = vmatpush1.msra.mxu0 0.0
      %1346 = vmatprep.subr.mxu0 0.0
      %1347 = vmatpush1.msra.mxu0 0.0
      %1348 = vmatprep.subr.mxu0 0.0
      %1349 = vmatpush1.msra.mxu0 0.0
      %1350 = vmatprep.subr.mxu0 0.0
      %1351 = vmatpush1.msra.mxu0 0.0
      %1352 = vmatprep.subr.mxu0 0.0
      %1353 = vmatpush1.msra.mxu0 0.0
      %1354 = vmatprep.subr.mxu0 0.0
      %1355 = vmatpush1.msra.mxu0 0.0
      %1356 = vmatprep.subr.mxu0 0.0
      %1357 = vmatpush1.msra.mxu0 0.0
      %1358 = vmatprep.subr.mxu0 0.0
      %1359 = vmatpush1.msra.mxu0 0.0
      %1360 = vmatprep.subr.mxu0 0.0
      %1361 = vmatpush1.msra.mxu0 0.0
      %1362 = vmatprep.subr.mxu0 0.0
      %1363 = vmatpush1.msra.mxu0 0.0
      %1364 = vmatprep.subr.mxu0 0.0
      %1365 = vmatpush1.msra.mxu0 0.0
      %1366 = vmatprep.mubr.f32.mxu0 0.0
      %v1367 = vand.u32 %v889, 4294901760
      %1368 = vmatmul.mubr.f32.gmra.mrb[0].mxu0 %v1367
      %v1369 = vpop.f32.mrb[0].mxu0
      %v1370 = vadd.f32 %v1269, %v1369
      %v1371 = vpop.f32.mrb[0].mxu0
      %1372 = vdwg.mxu0
      %1373 = vmatprep.subr.mxu0 0.0
      %v1374 = vand.u32 %v878, 4294901760
      %1375 = vmatpush1.msra.mxu0 %v1374
      %1376 = vmatprep.subr.mxu0 0.0
      %v1377 = vand.u32 %v879, 4294901760
      %1378 = vmatpush1.msra.mxu0 %v1377
      %1379 = vmatprep.subr.mxu0 0.0
      %v1380 = vand.u32 %v880, 4294901760
      %1381 = vmatpush1.msra.mxu0 %v1380
      %1382 = vmatprep.subr.mxu0 0.0
      %v1383 = vand.u32 %v881, 4294901760
      %1384 = vmatpush1.msra.mxu0 %v1383
      %1385 = vmatprep.subr.mxu0 0.0
      %v1386 = vand.u32 %v882, 4294901760
      %1387 = vmatpush1.msra.mxu0 %v1386
      %1388 = vmatprep.subr.mxu0 0.0
      %v1389 = vand.u32 %v883, 4294901760
      %1390 = vmatpush1.msra.mxu0 %v1389
      %1391 = vmatprep.subr.mxu0 0.0
      %v1392 = vand.u32 %v884, 4294901760
      %1393 = vmatpush1.msra.mxu0 %v1392
      %1394 = vmatprep.subr.mxu0 0.0
      %v1395 = vand.u32 %v885, 4294901760
      %1396 = vmatpush1.msra.mxu0 %v1395
      %1397 = vmatprep.subr.mxu0 0.0
      %v1398 = vand.u32 %v886, 4294901760
      %1399 = vmatpush1.msra.mxu0 %v1398
      %1400 = vmatprep.subr.mxu0 0.0
      %v1401 = vand.u32 %v887, 4294901760
      %1402 = vmatpush1.msra.mxu0 %v1401
      %1403 = vmatprep.subr.mxu0 0.0
      %1404 = vmatpush1.msra.mxu0 0.0
      %1405 = vmatprep.subr.mxu0 0.0
      %1406 = vmatpush1.msra.mxu0 0.0
      %1407 = vmatprep.subr.mxu0 0.0
      %1408 = vmatpush1.msra.mxu0 0.0
      %1409 = vmatprep.subr.mxu0 0.0
      %1410 = vmatpush1.msra.mxu0 0.0
      %1411 = vmatprep.subr.mxu0 0.0
      %1412 = vmatpush1.msra.mxu0 0.0
      %1413 = vmatprep.subr.mxu0 0.0
      %1414 = vmatpush1.msra.mxu0 0.0
      %1415 = vmatprep.subr.mxu0 0.0
      %1416 = vmatpush1.msra.mxu0 0.0
      %1417 = vmatprep.subr.mxu0 0.0
      %1418 = vmatpush1.msra.mxu0 0.0
      %1419 = vmatprep.subr.mxu0 0.0
      %1420 = vmatpush1.msra.mxu0 0.0
      %1421 = vmatprep.subr.mxu0 0.0
      %1422 = vmatpush1.msra.mxu0 0.0
      %1423 = vmatprep.subr.mxu0 0.0
      %1424 = vmatpush1.msra.mxu0 0.0
      %1425 = vmatprep.subr.mxu0 0.0
      %1426 = vmatpush1.msra.mxu0 0.0
      %1427 = vmatprep.subr.mxu0 0.0
      %1428 = vmatpush1.msra.mxu0 0.0
      %1429 = vmatprep.subr.mxu0 0.0
      %1430 = vmatpush1.msra.mxu0 0.0
      %1431 = vmatprep.subr.mxu0 0.0
      %1432 = vmatpush1.msra.mxu0 0.0
      %1433 = vmatprep.subr.mxu0 0.0
      %1434 = vmatpush1.msra.mxu0 0.0
      %1435 = vmatprep.subr.mxu0 0.0
      %1436 = vmatpush1.msra.mxu0 0.0
      %1437 = vmatprep.subr.mxu0 0.0
      %1438 = vmatpush1.msra.mxu0 0.0
      %1439 = vmatprep.subr.mxu0 0.0
      %1440 = vmatpush1.msra.mxu0 0.0
      %1441 = vmatprep.subr.mxu0 0.0
      %1442 = vmatpush1.msra.mxu0 0.0
      %1443 = vmatprep.subr.mxu0 0.0
      %1444 = vmatpush1.msra.mxu0 0.0
      %1445 = vmatprep.subr.mxu0 0.0
      %1446 = vmatpush1.msra.mxu0 0.0
      %1447 = vmatprep.mubr.f32.mxu0 0.0
      %v1448 = vand.u32 %v889, 4294901760
      %1449 = vmatmul.mubr.f32.gmra.mrb[0].mxu0 %v1448
      %v1450 = vpop.f32.mrb[0].mxu0
      %v1451 = vadd.f32 %v1370, %v1450
      %v1452 = vpop.f32.mrb[0].mxu0
      %1453 = vdwg.mxu0
      %v1454 = vand.u32 2147483647, %v1451
      %vm1455 = vcmask 523264
      %v1456 = vsel %vm1455, %v1454, 0.0
      %1457 = vadd.xlane.f32.xlu0 %v1456
      %v1458 = vpop.xlane.xlu0 %1457
      %v1459 = vstv %s401
      %v1460 = vmul.f32 %v1459, %v1458
      %v1461 = vsub.f32 %v874, %v1460
      %vm1462 = vcmask 7168
      %1463 = vst.msk [vmem:[%s399] sm:$0xff] %vm1462, %v1461
      %s1464 = sadd.s32 %s25, %s24
      %p1465 = scmp.lt.s32.totalorder %s1464, 7
      %s1466 = scalar_select %p1465, %s1464, 7
      %s1467 = smul.addr %s1466, 8
      %s1468 = scalar_lea.vmem %s8, %s1467
      // Predicated region
      $region53: #{tpu_custom_call.1} parent=51 // pred_check
        %p1469 = pneg %p249
      $region54: #{tpu_custom_call.1} parent=51 // pred_check_branch
        %1471 = sbr.rel (%p1469) target = $region56
      $region55: #{tpu_custom_call.1} parent=51 // pred_region
        %s1472 = sadd.s32 %s25, %s24
      $region56: #{tpu_custom_call.1} parent=51 // pred_fallthru
        _
    $region52: #{tpu_custom_call.1} parent=5 // pred_fallthru
      _
    %p1473 = scmp.le.s32.totalorder 2, %s15
    // Predicated region
    $region57: #{tpu_custom_call.1} parent=5 // pred_check
      %p1474 = pneg %p1473
    $region58: #{tpu_custom_call.1} parent=5 // pred_check_branch
      %1476 = sbr.rel (%p1474) target = $region60
    $region59: #{tpu_custom_call.1} parent=5 // pred_region
      %s1477 = ssub.s32 %s15, 2
      // Predicated region
      $region61: #{tpu_custom_call.1} parent=59 // pred_check
        %p1478 = pneg %p255
      $region62: #{tpu_custom_call.1} parent=59 // pred_check_branch
        %1480 = sbr.rel (%p1478) target = $region64
      $region63: #{tpu_custom_call.1} parent=59 // pred_region
        %s1481 = sadd.s32 %s27, %s26
        %p1482 = scmp.lt.s32.totalorder %s1481, 7
        %s1483 = scalar_select %p1482, %s1481, 7
        %s1484 = smul.addr %s1483, 8
        %s1485 = scalar_lea.vmem %s8, %s1484
      $region64: #{tpu_custom_call.1} parent=59 // pred_fallthru
        _
    $region60: #{tpu_custom_call.1} parent=5 // pred_fallthru
      _
  $region6: #{tpu_custom_call.1} parent=0 // loop_footer
    %s19 = sadd.s32 1, %s15
  $region7: #{tpu_custom_call.1} parent=0 // loop_footer_branch
    %14 = sbr.rel target = $region3
  $region8: #{tpu_custom_call.1} parent=0 // loop_exit
    _

</llo_original>
